<compile_context>
chip_gen: v7x
topology: tpu7x:2x2x1
jax: 0.10.0
libtpu: 0.0.40
codegen_flags: <defaults>
</compile_context>

<pallas_src>
import math
import functools
from dataclasses import dataclass

import jax
import jax.numpy as jnp
from jax.experimental import pallas as pl
from jax.experimental.pallas import tpu as pltpu


# ----------------------------- config ---------------------------------------


@dataclass
class GPTConfig:
    vocab_size: int = 128
    block_size: int = 16
    n_layer: int = 2
    n_head: int = 4
    n_embd: int = 32
    flash_attn: bool = True


# ----------------------------- tiling helpers --------------------------------


def _device_kind():
    try:
        return jax.devices()[0].device_kind.lower()
    except Exception:
        return ""


def _matmul_tiles():
    # v5e MXU is 4x128x128 with a single vector-store slot -> 128-square tiles.
    # v6e / v7x MXU is 2x256x256 -> 256 tiles (re-budgeted for 64 MiB on v7x).
    if "v5" in _device_kind():
        return 128, 128, 512
    return 256, 256, 512


def _compiler_params(sem):
    # 48 MiB scoped VMEM: comfortably inside v5e/v6e 128 MiB and leaves
    # headroom on v7x's 64 MiB per-TensorCore VMEM.
    return pltpu.CompilerParams(
        dimension_semantics=sem,
        vmem_limit_bytes=48 * 1024 * 1024,
    )


def _k_tile(k_dim, target):
    """Largest multiple of 128 <= target that divides k_dim, else full k_dim.

    The K axis is a reduction: padded/garbage K elements would corrupt the
    accumulator, so the tile must divide K exactly (and stay lane-aligned).
    """
    if k_dim <= target:
        return k_dim
    t = (target // 128) * 128
    while t >= 128:
        if k_dim % t == 0:
            return t
        t -= 128
    return k_dim


# ----------------------------- kernels --------------------------------------


def _ln_matmul_kernel(x_ref, g_ref, b_ref, w_ref, bias_ref, o_ref, *, activation):
    # x_ref: (tm, K) f32   g_ref/b_ref: (1, K) f32
    # w_ref: (K, tn) bf16  bias_ref: (1, tn) f32   o_ref: (tm, tn) f32
    x = x_ref[...].astype(jnp.float32)
    mean = jnp.mean(x, axis=-1, keepdims=True)
    var = jnp.mean(jnp.square(x - mean), axis=-1, keepdims=True)
    xn = (x - mean) * jax.lax.rsqrt(var + 1e-5)
    xn = xn * g_ref[...] + b_ref[...]
    acc = jnp.dot(xn.astype(w_ref.dtype), w_ref[...],
                  preferred_element_type=jnp.float32)
    acc = acc + bias_ref[...].astype(jnp.float32)
    if activation == "gelu_tanh":
        c = 0.7978845608028654  # sqrt(2/pi)
        acc = 0.5 * acc * (1.0 + jnp.tanh(c * (acc + 0.044715 * acc * acc * acc)))
    o_ref[...] = acc.astype(o_ref.dtype)


def _matmul_residual_kernel(x_ref, w_ref, bias_ref, r_ref, o_ref, acc_ref):
    # out = residual + x @ w + bias, accumulated over the K grid axis.
    # x_ref: (tm, tk) f32  w_ref: (tk, tn) bf16  bias_ref: (1, tn) f32
    # r_ref/o_ref/acc_ref: (tm, tn) f32
    k = pl.program_id(2)

    @pl.when(k == 0)
    def _():
        acc_ref[...] = jnp.zeros_like(acc_ref)

    acc_ref[...] += jnp.dot(x_ref[...].astype(w_ref.dtype), w_ref[...],
                            preferred_element_type=jnp.float32)

    @pl.when(k == pl.num_programs(2) - 1)
    def _():
        out = acc_ref[...] + bias_ref[...].astype(jnp.float32) \
            + r_ref[...].astype(jnp.float32)
        o_ref[...] = out.astype(o_ref.dtype)


def _flash_attn_kernel(qkv_q_ref, qkv_kv_ref, o_ref, m_sc, l_sc, acc_sc,
                       *, n_head, scale, tkv):
    # qkv_q_ref : (1, T, 3C)   query view, resident across the KV axis
    # qkv_kv_ref: (1, tkv, 3C) streamed KV tile
    # o_ref     : (1, T, C)    lane-dense output written once at the last KV step
    # m_sc/l_sc : (H, T, 1) f32 online-softmax stats;  acc_sc: (H, T, hd) f32
    kv_i = pl.program_id(1)
    T = qkv_q_ref.shape[1]
    C = qkv_q_ref.shape[2] // 3
    H = n_head
    hd = C // H

    @pl.when(kv_i == 0)
    def _():
        m_sc[...] = jnp.full(m_sc.shape, -jnp.inf, m_sc.dtype)
        l_sc[...] = jnp.zeros(l_sc.shape, l_sc.dtype)
        acc_sc[...] = jnp.zeros(acc_sc.shape, acc_sc.dtype)

    qrows = qkv_q_ref[0]       # (T, 3C)  -- q | k | v packed on the lane axis
    kvrows = qkv_kv_ref[0]     # (tkv, 3C)

    # Causal mask with global key index; also masks any padded keys of a
    # ragged last KV tile (their global index is >= T > any query row).
    row = jax.lax.broadcasted_iota(jnp.int32, (T, tkv), 0)
    col = jax.lax.broadcasted_iota(jnp.int32, (T, tkv), 1) + kv_i * tkv
    causal = col <= row

    for h in range(H):  # static unroll over heads; all heads share one grid step
        q_h = qrows[:, h * hd:(h + 1) * hd].astype(jnp.bfloat16)              # (T, hd)
        k_h = kvrows[:, C + h * hd:C + (h + 1) * hd].astype(jnp.bfloat16)     # (tkv, hd)
        v_h = kvrows[:, 2 * C + h * hd:2 * C + (h + 1) * hd].astype(jnp.bfloat16)

        s = jax.lax.dot_general(q_h, k_h, (((1,), (1,)), ((), ())),
                                preferred_element_type=jnp.float32) * scale   # (T, tkv)
        s = jnp.where(causal, s, -jnp.inf)

        m_prev = m_sc[h]                                                      # (T, 1)
        m_new = jnp.maximum(m_prev, jnp.max(s, axis=-1, keepdims=True))
        alpha = jnp.exp(m_prev - m_new)
        p = jnp.exp(s - m_new)
        l_sc[h] = alpha * l_sc[h] + jnp.sum(p, axis=-1, keepdims=True)
        acc_sc[h] = alpha * acc_sc[h] + jnp.dot(
            p.astype(jnp.bfloat16), v_h, preferred_element_type=jnp.float32)
        m_sc[h] = m_new

    @pl.when(kv_i == pl.num_programs(1) - 1)
    def _():
        outs = [acc_sc[h] * pl.reciprocal(l_sc[h], approx=True) for h in range(H)]
        # Single lane-dense (T, C) store, already in (B, T, H*hd) layout.
        o_ref[0] = jnp.concatenate(outs, axis=-1).astype(o_ref.dtype)


# ----------------------------- wrappers -------------------------------------


def ln_linear(x, gamma, beta, w, bias=None, *, activation=None):
    """Fused LayerNorm(x) @ w + bias (+ tanh-GELU).  x:(M,K) f32, w:(K,N)."""
    M, K = x.shape
    Kw, N = w.shape
    assert K == Kw
    tm_t, tn_t, _ = _matmul_tiles()
    tm = min(tm_t, M)
    tn = min(tn_t, N)
    if bias is None:
        bias = jnp.zeros((N,), jnp.float32)
    kern = functools.partial(_ln_matmul_kernel, activation=activation)
    return pl.pallas_call(
        kern,
        out_shape=jax.ShapeDtypeStruct((M, N), jnp.float32),
        grid=(pl.cdiv(M, tm), pl.cdiv(N, tn)),
        in_specs=[
            pl.BlockSpec((tm, K), lambda i, j: (i, 0)),   # x tile resident across N
            pl.BlockSpec((1, K), lambda i, j: (0, 0)),
            pl.BlockSpec((1, K), lambda i, j: (0, 0)),
            pl.BlockSpec((K, tn), lambda i, j: (0, j)),   # weight streamed over N
            pl.BlockSpec((1, tn), lambda i, j: (0, j)),
        ],
        out_specs=pl.BlockSpec((tm, tn), lambda i, j: (i, j)),
        compiler_params=_compiler_params(("parallel", "parallel")),
    )(x, gamma.reshape(1, K), beta.reshape(1, K), w, bias.reshape(1, N))


def linear_residual(x, w, bias, residual):
    """residual + (x @ w + bias), with a (M, N, K) grid and f32 accumulator."""
    M, K = x.shape
    Kw, N = w.shape
    assert K == Kw and residual.shape == (M, N)
    tm_t, tn_t, tk_t = _matmul_tiles()
    tm = min(tm_t, M)
    tn = min(tn_t, N)
    tk = _k_tile(K, tk_t)
    return pl.pallas_call(
        _matmul_residual_kernel,
        out_shape=jax.ShapeDtypeStruct((M, N), jnp.float32),
        grid=(pl.cdiv(M, tm), pl.cdiv(N, tn), K // tk),
        in_specs=[
            pl.BlockSpec((tm, tk), lambda i, j, kk: (i, kk)),
            pl.BlockSpec((tk, tn), lambda i, j, kk: (kk, j)),
            pl.BlockSpec((1, tn), lambda i, j, kk: (0, j)),
            pl.BlockSpec((tm, tn), lambda i, j, kk: (i, j)),
        ],
        out_specs=pl.BlockSpec((tm, tn), lambda i, j, kk: (i, j)),
        scratch_shapes=[pltpu.VMEM((tm, tn), jnp.float32)],
        compiler_params=_compiler_params(("parallel", "parallel", "arbitrary")),
    )(x, w, bias.reshape(1, N), residual)


def causal_attention(qkv, n_head):
    """qkv: (B, T, 3C) f32 -> (B, T, C) f32.  Flash-style causal attention.

    The same qkv slab is passed twice: once as the resident query view and once
    as the streamed KV view, so no XLA-side split / transpose is needed.
    """
    B, T, C3 = qkv.shape
    C = C3 // 3
    hd = C // n_head
    tkv = T if T <= 512 else 512          # KV tile (multiple of 8 sublanes)
    kern = functools.partial(_flash_attn_kernel, n_head=n_head,
                             scale=1.0 / math.sqrt(hd), tkv=tkv)
    # TODO(synk): for very long sequences also tile the query axis (and skip
    # fully-masked KV tiles); at block_size<=512 the full-T query view is fine.
    return pl.pallas_call(
        kern,
        out_shape=jax.ShapeDtypeStruct((B, T, C), jnp.float32),
        grid=(B, pl.cdiv(T, tkv)),
        in_specs=[
            pl.BlockSpec((1, T, C3), lambda b, kv: (b, 0, 0)),
            pl.BlockSpec((1, tkv, C3), lambda b, kv: (b, kv, 0)),
        ],
        out_specs=pl.BlockSpec((1, T, C), lambda b, kv: (b, 0, 0)),
        scratch_shapes=[
            pltpu.VMEM((n_head, T, 1), jnp.float32),   # m
            pltpu.VMEM((n_head, T, 1), jnp.float32),   # l
            pltpu.VMEM((n_head, T, hd), jnp.float32),  # acc
        ],
        compiler_params=_compiler_params(("parallel", "arbitrary")),
    )(qkv, qkv)


# ----------------------------- model ----------------------------------------


def block_forward(p, xf, B, T, n_head):
    M, C = xf.shape

    # attention branch: LN1 fused into c_attn; residual fused into c_proj
    qkv = ln_linear(xf, p["ln1_g"], p["ln1_b"], p["w_attn"], p["b_attn"])   # (M, 3C)
    att = causal_attention(qkv.reshape(B, T, 3 * C), n_head)                # (B, T, C)
    xf = linear_residual(att.reshape(M, C), p["w_aproj"], p["b_aproj"], xf)

    # MLP branch: LN2 + c_fc + GELU fused; residual fused into c_proj
    h = ln_linear(xf, p["ln2_g"], p["ln2_b"], p["w_fc"], p["b_fc"],
                  activation="gelu_tanh")                                   # (M, 4C)
    xf = linear_residual(h, p["w_mproj"], p["b_mproj"], xf)
    return xf


def gpt_forward(params, tokens, cfg, targets=None):
    B, T = tokens.shape
    assert T <= cfg.block_size
    C, V = cfg.n_embd, cfg.vocab_size

    # token + position embeddings (gather stays in plain JAX)
    x = jnp.take(params["wte"], tokens, axis=0) + params["wpe"][:T][None, :, :]
    xf = x.reshape(B * T, C).astype(jnp.float32)

    for p in params["layers"]:
        xf = block_forward(p, xf, B, T, cfg.n_head)

    # final LayerNorm fused into the (pre-transposed, weight-tied) lm_head matmul
    logits = ln_linear(xf, params["ln_f_g"], params["ln_f_b"], params["lm_head_w"])
    logits = logits.reshape(B, T, V)

    loss = None
    if targets is not None:
        # TODO(synk): cross-entropy kept in plain JAX (cheap gather + reduction).
        logp = jax.nn.log_softmax(logits.reshape(-1, V).astype(jnp.float32), axis=-1)
        nll = -jnp.take_along_axis(logp, targets.reshape(-1, 1), axis=-1)
        loss = jnp.mean(nll)
    return logits, loss


# ----------------------------- init -----------------------------------------


def init_params(key, cfg):
    C, V = cfg.n_embd, cfg.vocab_size
    std = 0.02

    def normal(k, shape, dtype=jnp.float32):
        return (std * jax.random.normal(k, shape, dtype=jnp.float32)).astype(dtype)

    keys = jax.random.split(key, 2 + 4 * cfg.n_layer)
    wte = normal(keys[0], (V, C))                          # f32 for the gather
    params = {
        "wte": wte,
        "lm_head_w": wte.T.astype(jnp.bfloat16),           # tied weight, transposed once
        "wpe": normal(keys[1], (cfg.block_size, C)),
        "ln_f_g": jnp.ones((C,), jnp.float32),
        "ln_f_b": jnp.zeros((C,), jnp.float32),
        "layers": [],
    }
    ki = 2
    for _ in range(cfg.n_layer):
        layer = {
            "ln1_g": jnp.ones((C,), jnp.float32),
            "ln1_b": jnp.zeros((C,), jnp.float32),
            "w_attn": normal(keys[ki + 0], (C, 3 * C), jnp.bfloat16),
            "b_attn": jnp.zeros((3 * C,), jnp.float32),
            "w_aproj": normal(keys[ki + 1], (C, C), jnp.bfloat16),
            "b_aproj": jnp.zeros((C,), jnp.float32),
            "ln2_g": jnp.ones((C,), jnp.float32),
            "ln2_b": jnp.zeros((C,), jnp.float32),
            "w_fc": normal(keys[ki + 2], (C, 4 * C), jnp.bfloat16),
            "b_fc": jnp.zeros((4 * C,), jnp.float32),
            "w_mproj": normal(keys[ki + 3], (4 * C, C), jnp.bfloat16),
            "b_mproj": jnp.zeros((C,), jnp.float32),
        }
        ki += 4
        params["layers"].append(layer)
    return params


# ----------------------------- main -----------------------------------------


if __name__ == "__main__":
    cfg = GPTConfig(vocab_size=128, block_size=16, n_layer=2, n_head=4, n_embd=32)

    key = jax.random.PRNGKey(0)
    k_param, k_tok, k_tgt = jax.random.split(key, 3)

    params = init_params(k_param, cfg)
    B, T = 2, 8
    tokens = jax.random.randint(k_tok, (B, T), 0, cfg.vocab_size, dtype=jnp.int32)
    targets = jax.random.randint(k_tgt, (B, T), 0, cfg.vocab_size, dtype=jnp.int32)

    fwd = jax.jit(lambda p, tok, tgt: gpt_forward(p, tok, cfg, targets=tgt))
    logits, loss = fwd(params, tokens, targets)
    jax.block_until_ready(logits)
    jax.block_until_ready(loss)

    assert logits.shape == (B, T, cfg.vocab_size)
    assert loss.shape == ()
    assert bool(jnp.isfinite(loss))
    print("KERNEL_OK")
</pallas_src>

<mosaic_0001>
module attributes {stable_mosaic.version = 11 : i64} {
  func.func @_matmul_residual_kernel(%arg0: i32, %arg1: i32, %arg2: i32, %arg3: memref<16x32xf32, #tpu.memory_space<vmem>>, %arg4: memref<32x32xbf16, #tpu.memory_space<vmem>>, %arg5: memref<1x32xf32, #tpu.memory_space<vmem>>, %arg6: memref<16x32xf32, #tpu.memory_space<vmem>>, %arg7: memref<16x32xf32, #tpu.memory_space<vmem>>, %arg8: memref<16x32xf32, #tpu.memory_space<vmem>>) attributes {dimension_semantics = [#tpu.dimension_semantics<parallel>, #tpu.dimension_semantics<parallel>, #tpu.dimension_semantics<arbitrary>], iteration_bounds = array<i64: 1, 1, 1>, scalar_prefetch = 0 : i64, scratch_operands = 1 : i64, tpu.core_type = #tpu.core_type<tc>, window_params = [{transform_indices = @transform_0, window_bounds = array<i64: 16, 32>}, {transform_indices = @transform_1, window_bounds = array<i64: 32, 32>}, {transform_indices = @transform_2, window_bounds = array<i64: 1, 32>}, {transform_indices = @transform_3, window_bounds = array<i64: 16, 32>}, {transform_indices = @transform_4, window_bounds = array<i64: 16, 32>}]} {
    %c0_i32 = arith.constant 0 : i32
    %0 = arith.cmpi eq, %arg2, %c0_i32 : i32
    %1 = arith.extui %0 : i1 to i32
    %c0_i32_0 = arith.constant 0 : i32
    %2 = arith.cmpi ne, %1, %c0_i32_0 : i32
    scf.if %2 {
      %cst_10 = arith.constant 0.000000e+00 : f32
      %13 = vector.broadcast %cst_10 : f32 to vector<16x32xf32>
      %c0_11 = arith.constant 0 : index
      %c0_12 = arith.constant 0 : index
      %14 = vector.load %arg8[%c0_11, %c0_12] : memref<16x32xf32, #tpu.memory_space<vmem>>, vector<16x32xf32>
      tpu.vector_store %arg8[%c0_11, %c0_12], %13 {strides = array<i32>} : memref<16x32xf32, #tpu.memory_space<vmem>>, vector<16x32xf32>,
    } else {
    }
    %c0 = arith.constant 0 : index
    %c0_1 = arith.constant 0 : index
    %3 = vector.load %arg8[%c0, %c0_1] : memref<16x32xf32, #tpu.memory_space<vmem>>, vector<16x32xf32>
    %c0_2 = arith.constant 0 : index
    %c0_3 = arith.constant 0 : index
    %4 = vector.load %arg3[%c0_2, %c0_3] : memref<16x32xf32, #tpu.memory_space<vmem>>, vector<16x32xf32>
    %5 = arith.truncf %4 : vector<16x32xf32> to vector<16x32xbf16>
    %c0_4 = arith.constant 0 : index
    %c0_5 = arith.constant 0 : index
    %6 = vector.load %arg4[%c0_4, %c0_5] : memref<32x32xbf16, #tpu.memory_space<vmem>>, vector<32x32xbf16>
    %cst = arith.constant dense<0.000000e+00> : vector<16x32xf32>
    %7 = tpu.matmul %5, %6, %cst {dimension_numbers = #tpu.dot_dimension_numbers<[1], [0], [0], [1], [0, 0, 1, 1], [], []>} : vector<16x32xbf16>, vector<32x32xbf16>, vector<16x32xf32> -> vector<16x32xf32>
    %8 = arith.addf %3, %7 : vector<16x32xf32>
    %c0_6 = arith.constant 0 : index
    %c0_7 = arith.constant 0 : index
    %9 = vector.load %arg8[%c0_6, %c0_7] : memref<16x32xf32, #tpu.memory_space<vmem>>, vector<16x32xf32>
    tpu.vector_store %arg8[%c0_6, %c0_7], %8 {strides = array<i32>} : memref<16x32xf32, #tpu.memory_space<vmem>>, vector<16x32xf32>,
    %c0_i32_8 = arith.constant 0 : i32
    %10 = arith.cmpi eq, %arg2, %c0_i32_8 : i32
    %11 = arith.extui %10 : i1 to i32
    %c0_i32_9 = arith.constant 0 : i32
    %12 = arith.cmpi ne, %11, %c0_i32_9 : i32
    scf.if %12 {
      %c0_10 = arith.constant 0 : index
      %c0_11 = arith.constant 0 : index
      %13 = vector.load %arg8[%c0_10, %c0_11] : memref<16x32xf32, #tpu.memory_space<vmem>>, vector<16x32xf32>
      %c0_12 = arith.constant 0 : index
      %c0_13 = arith.constant 0 : index
      %14 = vector.load %arg5[%c0_12, %c0_13] : memref<1x32xf32, #tpu.memory_space<vmem>>, vector<1x32xf32>
      %15 = vector.broadcast %14 : vector<1x32xf32> to vector<16x32xf32>
      %16 = arith.addf %13, %15 : vector<16x32xf32>
      %c0_14 = arith.constant 0 : index
      %c0_15 = arith.constant 0 : index
      %17 = vector.load %arg6[%c0_14, %c0_15] : memref<16x32xf32, #tpu.memory_space<vmem>>, vector<16x32xf32>
      %18 = arith.addf %16, %17 : vector<16x32xf32>
      %c0_16 = arith.constant 0 : index
      %c0_17 = arith.constant 0 : index
      %19 = vector.load %arg7[%c0_16, %c0_17] : memref<16x32xf32, #tpu.memory_space<vmem>>, vector<16x32xf32>
      tpu.vector_store %arg7[%c0_16, %c0_17], %18 {strides = array<i32>} : memref<16x32xf32, #tpu.memory_space<vmem>>, vector<16x32xf32>,
    } else {
    }
    return
  }
  func.func @transform_0(%arg0: i32, %arg1: i32, %arg2: i32) -> (i32, i32) {
    %c0_i32 = arith.constant 0 : i32
    return %arg0, %arg2 : i32, i32
  }
  func.func @transform_1(%arg0: i32, %arg1: i32, %arg2: i32) -> (i32, i32) {
    %c0_i32 = arith.constant 0 : i32
    return %arg2, %arg1 : i32, i32
  }
  func.func @transform_2(%arg0: i32, %arg1: i32, %arg2: i32) -> (i32, i32) {
    %c0_i32 = arith.constant 0 : i32
    %c0_i32_0 = arith.constant 0 : i32
    return %c0_i32, %arg1 : i32, i32
  }
  func.func @transform_3(%arg0: i32, %arg1: i32, %arg2: i32) -> (i32, i32) {
    %c0_i32 = arith.constant 0 : i32
    return %arg0, %arg1 : i32, i32
  }
  func.func @transform_4(%arg0: i32, %arg1: i32, %arg2: i32) -> (i32, i32) {
    %c0_i32 = arith.constant 0 : i32
    return %arg0, %arg1 : i32, i32
  }
}

module attributes {stable_mosaic.version = 11 : i64} {
  func.func @_ln_matmul_kernel(%arg0: i32, %arg1: i32, %arg2: memref<16x32xf32, #tpu.memory_space<vmem>>, %arg3: memref<1x32xf32, #tpu.memory_space<vmem>>, %arg4: memref<1x32xf32, #tpu.memory_space<vmem>>, %arg5: memref<32x128xbf16, #tpu.memory_space<vmem>>, %arg6: memref<1x128xf32, #tpu.memory_space<vmem>>, %arg7: memref<16x128xf32, #tpu.memory_space<vmem>>) attributes {dimension_semantics = [#tpu.dimension_semantics<parallel>, #tpu.dimension_semantics<parallel>], iteration_bounds = array<i64: 1, 1>, scalar_prefetch = 0 : i64, scratch_operands = 0 : i64, tpu.core_type = #tpu.core_type<tc>, window_params = [{transform_indices = @transform_0, window_bounds = array<i64: 16, 32>}, {pipeline_mode = #tpu.pipeline_mode<synchronous>, transform_indices = @transform_1, window_bounds = array<i64: 1, 32>}, {pipeline_mode = #tpu.pipeline_mode<synchronous>, transform_indices = @transform_2, window_bounds = array<i64: 1, 32>}, {transform_indices = @transform_3, window_bounds = array<i64: 32, 128>}, {transform_indices = @transform_4, window_bounds = array<i64: 1, 128>}, {transform_indices = @transform_5, window_bounds = array<i64: 16, 128>}]} {
    %c0 = arith.constant 0 : index
    %c0_0 = arith.constant 0 : index
    %0 = vector.load %arg2[%c0, %c0_0] : memref<16x32xf32, #tpu.memory_space<vmem>>, vector<16x32xf32>
    %cst = arith.constant dense<0.000000e+00> : vector<16xf32>
    %1 = vector.multi_reduction <add>, %0, %cst [1] : vector<16x32xf32> to vector<16xf32>
    %2 = vector.shape_cast %1 : vector<16xf32> to vector<16x1xf32>
    %cst_1 = arith.constant 3.200000e+01 : f32
    %3 = vector.broadcast %cst_1 : f32 to vector<16x1xf32>
    %4 = arith.divf %2, %3 : vector<16x1xf32>
    %5 = vector.broadcast %4 : vector<16x1xf32> to vector<16x32xf32>
    %6 = arith.subf %0, %5 : vector<16x32xf32>
    %7 = arith.mulf %6, %6 : vector<16x32xf32>
    %cst_2 = arith.constant dense<0.000000e+00> : vector<16xf32>
    %8 = vector.multi_reduction <add>, %7, %cst_2 [1] : vector<16x32xf32> to vector<16xf32>
    %9 = vector.shape_cast %8 : vector<16xf32> to vector<16x1xf32>
    %cst_3 = arith.constant 3.200000e+01 : f32
    %10 = vector.broadcast %cst_3 : f32 to vector<16x1xf32>
    %11 = arith.divf %9, %10 : vector<16x1xf32>
    %12 = vector.broadcast %4 : vector<16x1xf32> to vector<16x32xf32>
    %13 = arith.subf %0, %12 : vector<16x32xf32>
    %cst_4 = arith.constant 9.99999974E-6 : f32
    %14 = vector.broadcast %cst_4 : f32 to vector<16x1xf32>
    %15 = arith.addf %11, %14 : vector<16x1xf32>
    %16 = math.rsqrt %15 : vector<16x1xf32>
    %17 = vector.broadcast %16 : vector<16x1xf32> to vector<16x32xf32>
    %18 = arith.mulf %13, %17 : vector<16x32xf32>
    %c0_5 = arith.constant 0 : index
    %c0_6 = arith.constant 0 : index
    %19 = vector.load %arg3[%c0_5, %c0_6] : memref<1x32xf32, #tpu.memory_space<vmem>>, vector<1x32xf32>
    %20 = vector.broadcast %19 : vector<1x32xf32> to vector<16x32xf32>
    %21 = arith.mulf %18, %20 : vector<16x32xf32>
    %c0_7 = arith.constant 0 : index
    %c0_8 = arith.constant 0 : index
    %22 = vector.load %arg4[%c0_7, %c0_8] : memref<1x32xf32, #tpu.memory_space<vmem>>, vector<1x32xf32>
    %23 = vector.broadcast %22 : vector<1x32xf32> to vector<16x32xf32>
    %24 = arith.addf %21, %23 : vector<16x32xf32>
    %25 = arith.truncf %24 : vector<16x32xf32> to vector<16x32xbf16>
    %c0_9 = arith.constant 0 : index
    %c0_10 = arith.constant 0 : index
    %26 = vector.load %arg5[%c0_9, %c0_10] : memref<32x128xbf16, #tpu.memory_space<vmem>>, vector<32x128xbf16>
    %cst_11 = arith.constant dense<0.000000e+00> : vector<16x128xf32>
    %27 = tpu.matmul %25, %26, %cst_11 {dimension_numbers = #tpu.dot_dimension_numbers<[1], [0], [0], [1], [0, 0, 1, 1], [], []>} : vector<16x32xbf16>, vector<32x128xbf16>, vector<16x128xf32> -> vector<16x128xf32>
    %c0_12 = arith.constant 0 : index
    %c0_13 = arith.constant 0 : index
    %28 = vector.load %arg6[%c0_12, %c0_13] : memref<1x128xf32, #tpu.memory_space<vmem>>, vector<1x128xf32>
    %29 = vector.broadcast %28 : vector<1x128xf32> to vector<16x128xf32>
    %30 = arith.addf %27, %29 : vector<16x128xf32>
    %cst_14 = arith.constant 5.000000e-01 : f32
    %31 = vector.broadcast %cst_14 : f32 to vector<16x128xf32>
    %32 = arith.mulf %31, %30 : vector<16x128xf32>
    %cst_15 = arith.constant 4.471500e-02 : f32
    %33 = vector.broadcast %cst_15 : f32 to vector<16x128xf32>
    %34 = arith.mulf %33, %30 : vector<16x128xf32>
    %35 = arith.mulf %34, %30 : vector<16x128xf32>
    %36 = arith.mulf %35, %30 : vector<16x128xf32>
    %37 = arith.addf %30, %36 : vector<16x128xf32>
    %cst_16 = arith.constant 0.797884583 : f32
    %38 = vector.broadcast %cst_16 : f32 to vector<16x128xf32>
    %39 = arith.mulf %38, %37 : vector<16x128xf32>
    %40 = math.tanh %39 : vector<16x128xf32>
    %cst_17 = arith.constant 1.000000e+00 : f32
    %41 = vector.broadcast %cst_17 : f32 to vector<16x128xf32>
    %42 = arith.addf %41, %40 : vector<16x128xf32>
    %43 = arith.mulf %32, %42 : vector<16x128xf32>
    %c0_18 = arith.constant 0 : index
    %c0_19 = arith.constant 0 : index
    %44 = vector.load %arg7[%c0_18, %c0_19] : memref<16x128xf32, #tpu.memory_space<vmem>>, vector<16x128xf32>
    tpu.vector_store %arg7[%c0_18, %c0_19], %43 {strides = array<i32>} : memref<16x128xf32, #tpu.memory_space<vmem>>, vector<16x128xf32>,
    return
  }
  func.func @transform_0(%arg0: i32, %arg1: i32) -> (i32, i32) {
    %c0_i32 = arith.constant 0 : i32
    %c0_i32_0 = arith.constant 0 : i32
    return %arg0, %c0_i32 : i32, i32
  }
  func.func @transform_1(%arg0: i32, %arg1: i32) -> (i32, i32) {
    %c0_i32 = arith.constant 0 : i32
    %c0_i32_0 = arith.constant 0 : i32
    %c0_i32_1 = arith.constant 0 : i32
    return %c0_i32, %c0_i32_0 : i32, i32
  }
  func.func @transform_2(%arg0: i32, %arg1: i32) -> (i32, i32) {
    %c0_i32 = arith.constant 0 : i32
    %c0_i32_0 = arith.constant 0 : i32
    %c0_i32_1 = arith.constant 0 : i32
    return %c0_i32, %c0_i32_0 : i32, i32
  }
  func.func @transform_3(%arg0: i32, %arg1: i32) -> (i32, i32) {
    %c0_i32 = arith.constant 0 : i32
    %c0_i32_0 = arith.constant 0 : i32
    return %c0_i32, %arg1 : i32, i32
  }
  func.func @transform_4(%arg0: i32, %arg1: i32) -> (i32, i32) {
    %c0_i32 = arith.constant 0 : i32
    %c0_i32_0 = arith.constant 0 : i32
    return %c0_i32, %arg1 : i32, i32
  }
  func.func @transform_5(%arg0: i32, %arg1: i32) -> (i32, i32) {
    %c0_i32 = arith.constant 0 : i32
    return %arg0, %arg1 : i32, i32
  }
}

module attributes {stable_mosaic.version = 11 : i64} {
  func.func @_ln_matmul_kernel(%arg0: i32, %arg1: i32, %arg2: memref<16x32xf32, #tpu.memory_space<vmem>>, %arg3: memref<1x32xf32, #tpu.memory_space<vmem>>, %arg4: memref<1x32xf32, #tpu.memory_space<vmem>>, %arg5: memref<32x96xbf16, #tpu.memory_space<vmem>>, %arg6: memref<1x96xf32, #tpu.memory_space<vmem>>, %arg7: memref<16x96xf32, #tpu.memory_space<vmem>>) attributes {dimension_semantics = [#tpu.dimension_semantics<parallel>, #tpu.dimension_semantics<parallel>], iteration_bounds = array<i64: 1, 1>, scalar_prefetch = 0 : i64, scratch_operands = 0 : i64, tpu.core_type = #tpu.core_type<tc>, window_params = [{transform_indices = @transform_0, window_bounds = array<i64: 16, 32>}, {pipeline_mode = #tpu.pipeline_mode<synchronous>, transform_indices = @transform_1, window_bounds = array<i64: 1, 32>}, {pipeline_mode = #tpu.pipeline_mode<synchronous>, transform_indices = @transform_2, window_bounds = array<i64: 1, 32>}, {transform_indices = @transform_3, window_bounds = array<i64: 32, 96>}, {transform_indices = @transform_4, window_bounds = array<i64: 1, 96>}, {transform_indices = @transform_5, window_bounds = array<i64: 16, 96>}]} {
    %c0 = arith.constant 0 : index
    %c0_0 = arith.constant 0 : index
    %0 = vector.load %arg2[%c0, %c0_0] : memref<16x32xf32, #tpu.memory_space<vmem>>, vector<16x32xf32>
    %cst = arith.constant dense<0.000000e+00> : vector<16xf32>
    %1 = vector.multi_reduction <add>, %0, %cst [1] : vector<16x32xf32> to vector<16xf32>
    %2 = vector.shape_cast %1 : vector<16xf32> to vector<16x1xf32>
    %cst_1 = arith.constant 3.200000e+01 : f32
    %3 = vector.broadcast %cst_1 : f32 to vector<16x1xf32>
    %4 = arith.divf %2, %3 : vector<16x1xf32>
    %5 = vector.broadcast %4 : vector<16x1xf32> to vector<16x32xf32>
    %6 = arith.subf %0, %5 : vector<16x32xf32>
    %7 = arith.mulf %6, %6 : vector<16x32xf32>
    %cst_2 = arith.constant dense<0.000000e+00> : vector<16xf32>
    %8 = vector.multi_reduction <add>, %7, %cst_2 [1] : vector<16x32xf32> to vector<16xf32>
    %9 = vector.shape_cast %8 : vector<16xf32> to vector<16x1xf32>
    %cst_3 = arith.constant 3.200000e+01 : f32
    %10 = vector.broadcast %cst_3 : f32 to vector<16x1xf32>
    %11 = arith.divf %9, %10 : vector<16x1xf32>
    %12 = vector.broadcast %4 : vector<16x1xf32> to vector<16x32xf32>
    %13 = arith.subf %0, %12 : vector<16x32xf32>
    %cst_4 = arith.constant 9.99999974E-6 : f32
    %14 = vector.broadcast %cst_4 : f32 to vector<16x1xf32>
    %15 = arith.addf %11, %14 : vector<16x1xf32>
    %16 = math.rsqrt %15 : vector<16x1xf32>
    %17 = vector.broadcast %16 : vector<16x1xf32> to vector<16x32xf32>
    %18 = arith.mulf %13, %17 : vector<16x32xf32>
    %c0_5 = arith.constant 0 : index
    %c0_6 = arith.constant 0 : index
    %19 = vector.load %arg3[%c0_5, %c0_6] : memref<1x32xf32, #tpu.memory_space<vmem>>, vector<1x32xf32>
    %20 = vector.broadcast %19 : vector<1x32xf32> to vector<16x32xf32>
    %21 = arith.mulf %18, %20 : vector<16x32xf32>
    %c0_7 = arith.constant 0 : index
    %c0_8 = arith.constant 0 : index
    %22 = vector.load %arg4[%c0_7, %c0_8] : memref<1x32xf32, #tpu.memory_space<vmem>>, vector<1x32xf32>
    %23 = vector.broadcast %22 : vector<1x32xf32> to vector<16x32xf32>
    %24 = arith.addf %21, %23 : vector<16x32xf32>
    %25 = arith.truncf %24 : vector<16x32xf32> to vector<16x32xbf16>
    %c0_9 = arith.constant 0 : index
    %c0_10 = arith.constant 0 : index
    %26 = vector.load %arg5[%c0_9, %c0_10] : memref<32x96xbf16, #tpu.memory_space<vmem>>, vector<32x96xbf16>
    %cst_11 = arith.constant dense<0.000000e+00> : vector<16x96xf32>
    %27 = tpu.matmul %25, %26, %cst_11 {dimension_numbers = #tpu.dot_dimension_numbers<[1], [0], [0], [1], [0, 0, 1, 1], [], []>} : vector<16x32xbf16>, vector<32x96xbf16>, vector<16x96xf32> -> vector<16x96xf32>
    %c0_12 = arith.constant 0 : index
    %c0_13 = arith.constant 0 : index
    %28 = vector.load %arg6[%c0_12, %c0_13] : memref<1x96xf32, #tpu.memory_space<vmem>>, vector<1x96xf32>
    %29 = vector.broadcast %28 : vector<1x96xf32> to vector<16x96xf32>
    %30 = arith.addf %27, %29 : vector<16x96xf32>
    %c0_14 = arith.constant 0 : index
    %c0_15 = arith.constant 0 : index
    %31 = vector.load %arg7[%c0_14, %c0_15] : memref<16x96xf32, #tpu.memory_space<vmem>>, vector<16x96xf32>
    tpu.vector_store %arg7[%c0_14, %c0_15], %30 {strides = array<i32>} : memref<16x96xf32, #tpu.memory_space<vmem>>, vector<16x96xf32>,
    return
  }
  func.func @transform_0(%arg0: i32, %arg1: i32) -> (i32, i32) {
    %c0_i32 = arith.constant 0 : i32
    %c0_i32_0 = arith.constant 0 : i32
    return %arg0, %c0_i32 : i32, i32
  }
  func.func @transform_1(%arg0: i32, %arg1: i32) -> (i32, i32) {
    %c0_i32 = arith.constant 0 : i32
    %c0_i32_0 = arith.constant 0 : i32
    %c0_i32_1 = arith.constant 0 : i32
    return %c0_i32, %c0_i32_0 : i32, i32
  }
  func.func @transform_2(%arg0: i32, %arg1: i32) -> (i32, i32) {
    %c0_i32 = arith.constant 0 : i32
    %c0_i32_0 = arith.constant 0 : i32
    %c0_i32_1 = arith.constant 0 : i32
    return %c0_i32, %c0_i32_0 : i32, i32
  }
  func.func @transform_3(%arg0: i32, %arg1: i32) -> (i32, i32) {
    %c0_i32 = arith.constant 0 : i32
    %c0_i32_0 = arith.constant 0 : i32
    return %c0_i32, %arg1 : i32, i32
  }
  func.func @transform_4(%arg0: i32, %arg1: i32) -> (i32, i32) {
    %c0_i32 = arith.constant 0 : i32
    %c0_i32_0 = arith.constant 0 : i32
    return %c0_i32, %arg1 : i32, i32
  }
  func.func @transform_5(%arg0: i32, %arg1: i32) -> (i32, i32) {
    %c0_i32 = arith.constant 0 : i32
    return %arg0, %arg1 : i32, i32
  }
}

module attributes {stable_mosaic.version = 11 : i64} {
  func.func @_flash_attn_kernel(%arg0: i32, %arg1: i32, %arg2: memref<1x8x96xf32, #tpu.memory_space<vmem>>, %arg3: memref<1x8x96xf32, #tpu.memory_space<vmem>>, %arg4: memref<1x8x32xf32, #tpu.memory_space<vmem>>, %arg5: memref<4x8x1xf32, #tpu.memory_space<vmem>>, %arg6: memref<4x8x1xf32, #tpu.memory_space<vmem>>, %arg7: memref<4x8x8xf32, #tpu.memory_space<vmem>>) attributes {dimension_semantics = [#tpu.dimension_semantics<parallel>, #tpu.dimension_semantics<arbitrary>], iteration_bounds = array<i64: 2, 1>, scalar_prefetch = 0 : i64, scratch_operands = 3 : i64, tpu.core_type = #tpu.core_type<tc>, window_params = [{transform_indices = @transform_0, window_bounds = array<i64: 1, 8, 96>}, {transform_indices = @transform_1, window_bounds = array<i64: 1, 8, 96>}, {transform_indices = @transform_2, window_bounds = array<i64: 1, 8, 32>}]} {
    %c0_i32 = arith.constant 0 : i32
    %0 = arith.cmpi eq, %arg1, %c0_i32 : i32
    %1 = arith.extui %0 : i1 to i32
    %c0_i32_0 = arith.constant 0 : i32
    %2 = arith.cmpi ne, %1, %c0_i32_0 : i32
    scf.if %2 {
      %cst_100 = arith.constant 0xFF800000 : f32
      %188 = vector.broadcast %cst_100 : f32 to vector<4x8x1xf32>
      %c0_101 = arith.constant 0 : index
      %c0_102 = arith.constant 0 : index
      %c0_103 = arith.constant 0 : index
      %189 = vector.load %arg5[%c0_101, %c0_102, %c0_103] : memref<4x8x1xf32, #tpu.memory_space<vmem>>, vector<4x8x1xf32>
      tpu.vector_store %arg5[%c0_101, %c0_102, %c0_103], %188 {strides = array<i32>} : memref<4x8x1xf32, #tpu.memory_space<vmem>>, vector<4x8x1xf32>,
      %cst_104 = arith.constant 0.000000e+00 : f32
      %190 = vector.broadcast %cst_104 : f32 to vector<4x8x1xf32>
      %c0_105 = arith.constant 0 : index
      %c0_106 = arith.constant 0 : index
      %c0_107 = arith.constant 0 : index
      %191 = vector.load %arg6[%c0_105, %c0_106, %c0_107] : memref<4x8x1xf32, #tpu.memory_space<vmem>>, vector<4x8x1xf32>
      tpu.vector_store %arg6[%c0_105, %c0_106, %c0_107], %190 {strides = array<i32>} : memref<4x8x1xf32, #tpu.memory_space<vmem>>, vector<4x8x1xf32>,
      %cst_108 = arith.constant 0.000000e+00 : f32
      %192 = vector.broadcast %cst_108 : f32 to vector<4x8x8xf32>
      %c0_109 = arith.constant 0 : index
      %c0_110 = arith.constant 0 : index
      %c0_111 = arith.constant 0 : index
      %193 = vector.load %arg7[%c0_109, %c0_110, %c0_111] : memref<4x8x8xf32, #tpu.memory_space<vmem>>, vector<4x8x8xf32>
      tpu.vector_store %arg7[%c0_109, %c0_110, %c0_111], %192 {strides = array<i32>} : memref<4x8x8xf32, #tpu.memory_space<vmem>>, vector<4x8x8xf32>,
    } else {
    }
    %c0 = arith.constant 0 : index
    %c0_1 = arith.constant 0 : index
    %c0_2 = arith.constant 0 : index
    %3 = vector.load %arg2[%c0, %c0_1, %c0_2] : memref<1x8x96xf32, #tpu.memory_space<vmem>>, vector<1x8x96xf32>
    %4 = vector.shape_cast %3 : vector<1x8x96xf32> to vector<8x96xf32>
    %c0_3 = arith.constant 0 : index
    %c0_4 = arith.constant 0 : index
    %c0_5 = arith.constant 0 : index
    %5 = vector.load %arg3[%c0_3, %c0_4, %c0_5] : memref<1x8x96xf32, #tpu.memory_space<vmem>>, vector<1x8x96xf32>
    %6 = vector.shape_cast %5 : vector<1x8x96xf32> to vector<8x96xf32>
    %7 = tpu.iota {dimensions = array<i32: 0>} : vector<8x8xi32>
    %8 = tpu.iota {dimensions = array<i32: 1>} : vector<8x8xi32>
    %c8_i32 = arith.constant 8 : i32
    %9 = arith.muli %arg1, %c8_i32 : i32
    %10 = vector.broadcast %9 : i32 to vector<8x8xi32>
    %11 = arith.addi %8, %10 : vector<8x8xi32>
    %12 = arith.cmpi sle, %11, %7 : vector<8x8xi32>
    %13 = vector.extract_strided_slice %4 {offsets = [0, 0], sizes = [8, 8], strides = [1, 1]} : vector<8x96xf32> to vector<8x8xf32>
    %14 = arith.truncf %13 : vector<8x8xf32> to vector<8x8xbf16>
    %15 = vector.extract_strided_slice %6 {offsets = [0, 32], sizes = [8, 8], strides = [1, 1]} : vector<8x96xf32> to vector<8x8xf32>
    %16 = arith.truncf %15 : vector<8x8xf32> to vector<8x8xbf16>
    %17 = vector.extract_strided_slice %6 {offsets = [0, 64], sizes = [8, 8], strides = [1, 1]} : vector<8x96xf32> to vector<8x8xf32>
    %18 = arith.truncf %17 : vector<8x8xf32> to vector<8x8xbf16>
    %cst = arith.constant dense<0.000000e+00> : vector<8x8xf32>
    %19 = tpu.matmul %14, %16, %cst {dimension_numbers = #tpu.dot_dimension_numbers<[1], [1], [0], [0], [0, 0, 1, 0], [], []>} : vector<8x8xbf16>, vector<8x8xbf16>, vector<8x8xf32> -> vector<8x8xf32>
    %cst_6 = arith.constant 0.353553385 : f32
    %20 = vector.broadcast %cst_6 : f32 to vector<8x8xf32>
    %21 = arith.mulf %19, %20 : vector<8x8xf32>
    %cst_7 = arith.constant 0xFF800000 : f32
    %22 = vector.broadcast %cst_7 : f32 to vector<8x8xf32>
    %23 = arith.select %12, %21, %22 : vector<8x8xi1>, vector<8x8xf32>
    %c0_8 = arith.constant 0 : index
    %c0_9 = arith.constant 0 : index
    %c0_10 = arith.constant 0 : index
    %24 = vector.load %arg5[%c0_8, %c0_9, %c0_10] : memref<4x8x1xf32, #tpu.memory_space<vmem>>, vector<1x8x1xf32>
    %25 = vector.shape_cast %24 : vector<1x8x1xf32> to vector<8x1xf32>
    %cst_11 = arith.constant dense<0xFF800000> : vector<8xf32>
    %26 = vector.multi_reduction <maximumf>, %23, %cst_11 [1] : vector<8x8xf32> to vector<8xf32>
    %27 = vector.shape_cast %26 : vector<8xf32> to vector<8x1xf32>
    %28 = arith.maximumf %25, %27 : vector<8x1xf32>
    %29 = arith.subf %25, %28 : vector<8x1xf32>
    %30 = math.exp %29 : vector<8x1xf32>
    %31 = vector.broadcast %28 : vector<8x1xf32> to vector<8x8xf32>
    %32 = arith.subf %23, %31 : vector<8x8xf32>
    %33 = math.exp %32 : vector<8x8xf32>
    %c0_12 = arith.constant 0 : index
    %c0_13 = arith.constant 0 : index
    %c0_14 = arith.constant 0 : index
    %34 = vector.load %arg6[%c0_12, %c0_13, %c0_14] : memref<4x8x1xf32, #tpu.memory_space<vmem>>, vector<1x8x1xf32>
    %35 = vector.shape_cast %34 : vector<1x8x1xf32> to vector<8x1xf32>
    %36 = arith.mulf %30, %35 : vector<8x1xf32>
    %cst_15 = arith.constant dense<0.000000e+00> : vector<8xf32>
    %37 = vector.multi_reduction <add>, %33, %cst_15 [1] : vector<8x8xf32> to vector<8xf32>
    %38 = vector.shape_cast %37 : vector<8xf32> to vector<8x1xf32>
    %39 = arith.addf %36, %38 : vector<8x1xf32>
    %c0_16 = arith.constant 0 : index
    %c0_17 = arith.constant 0 : index
    %c0_18 = arith.constant 0 : index
    %40 = vector.load %arg6[%c0_16, %c0_17, %c0_18] : memref<4x8x1xf32, #tpu.memory_space<vmem>>, vector<1x8x1xf32>
    %41 = vector.shape_cast %40 : vector<1x8x1xf32> to vector<8x1xf32>
    %42 = vector.shape_cast %39 : vector<8x1xf32> to vector<1x8x1xf32>
    tpu.vector_store %arg6[%c0_16, %c0_17, %c0_18], %42 {strides = array<i32>} : memref<4x8x1xf32, #tpu.memory_space<vmem>>, vector<1x8x1xf32>,
    %c0_19 = arith.constant 0 : index
    %c0_20 = arith.constant 0 : index
    %c0_21 = arith.constant 0 : index
    %43 = vector.load %arg7[%c0_19, %c0_20, %c0_21] : memref<4x8x8xf32, #tpu.memory_space<vmem>>, vector<1x8x8xf32>
    %44 = vector.shape_cast %43 : vector<1x8x8xf32> to vector<8x8xf32>
    %45 = vector.broadcast %30 : vector<8x1xf32> to vector<8x8xf32>
    %46 = arith.mulf %45, %44 : vector<8x8xf32>
    %47 = arith.truncf %33 : vector<8x8xf32> to vector<8x8xbf16>
    %cst_22 = arith.constant dense<0.000000e+00> : vector<8x8xf32>
    %48 = tpu.matmul %47, %18, %cst_22 {dimension_numbers = #tpu.dot_dimension_numbers<[1], [0], [0], [1], [0, 0, 1, 1], [], []>} : vector<8x8xbf16>, vector<8x8xbf16>, vector<8x8xf32> -> vector<8x8xf32>
    %49 = arith.addf %46, %48 : vector<8x8xf32>
    %c0_23 = arith.constant 0 : index
    %c0_24 = arith.constant 0 : index
    %c0_25 = arith.constant 0 : index
    %50 = vector.load %arg7[%c0_23, %c0_24, %c0_25] : memref<4x8x8xf32, #tpu.memory_space<vmem>>, vector<1x8x8xf32>
    %51 = vector.shape_cast %50 : vector<1x8x8xf32> to vector<8x8xf32>
    %52 = vector.shape_cast %49 : vector<8x8xf32> to vector<1x8x8xf32>
    tpu.vector_store %arg7[%c0_23, %c0_24, %c0_25], %52 {strides = array<i32>} : memref<4x8x8xf32, #tpu.memory_space<vmem>>, vector<1x8x8xf32>,
    %c0_26 = arith.constant 0 : index
    %c0_27 = arith.constant 0 : index
    %c0_28 = arith.constant 0 : index
    %53 = vector.load %arg5[%c0_26, %c0_27, %c0_28] : memref<4x8x1xf32, #tpu.memory_space<vmem>>, vector<1x8x1xf32>
    %54 = vector.shape_cast %53 : vector<1x8x1xf32> to vector<8x1xf32>
    %55 = vector.shape_cast %28 : vector<8x1xf32> to vector<1x8x1xf32>
    tpu.vector_store %arg5[%c0_26, %c0_27, %c0_28], %55 {strides = array<i32>} : memref<4x8x1xf32, #tpu.memory_space<vmem>>, vector<1x8x1xf32>,
    %56 = vector.extract_strided_slice %4 {offsets = [0, 8], sizes = [8, 8], strides = [1, 1]} : vector<8x96xf32> to vector<8x8xf32>
    %57 = arith.truncf %56 : vector<8x8xf32> to vector<8x8xbf16>
    %58 = vector.extract_strided_slice %6 {offsets = [0, 40], sizes = [8, 8], strides = [1, 1]} : vector<8x96xf32> to vector<8x8xf32>
    %59 = arith.truncf %58 : vector<8x8xf32> to vector<8x8xbf16>
    %60 = vector.extract_strided_slice %6 {offsets = [0, 72], sizes = [8, 8], strides = [1, 1]} : vector<8x96xf32> to vector<8x8xf32>
    %61 = arith.truncf %60 : vector<8x8xf32> to vector<8x8xbf16>
    %cst_29 = arith.constant dense<0.000000e+00> : vector<8x8xf32>
    %62 = tpu.matmul %57, %59, %cst_29 {dimension_numbers = #tpu.dot_dimension_numbers<[1], [1], [0], [0], [0, 0, 1, 0], [], []>} : vector<8x8xbf16>, vector<8x8xbf16>, vector<8x8xf32> -> vector<8x8xf32>
    %cst_30 = arith.constant 0.353553385 : f32
    %63 = vector.broadcast %cst_30 : f32 to vector<8x8xf32>
    %64 = arith.mulf %62, %63 : vector<8x8xf32>
    %cst_31 = arith.constant 0xFF800000 : f32
    %65 = vector.broadcast %cst_31 : f32 to vector<8x8xf32>
    %66 = arith.select %12, %64, %65 : vector<8x8xi1>, vector<8x8xf32>
    %c1 = arith.constant 1 : index
    %c0_32 = arith.constant 0 : index
    %c0_33 = arith.constant 0 : index
    %67 = vector.load %arg5[%c1, %c0_32, %c0_33] : memref<4x8x1xf32, #tpu.memory_space<vmem>>, vector<1x8x1xf32>
    %68 = vector.shape_cast %67 : vector<1x8x1xf32> to vector<8x1xf32>
    %cst_34 = arith.constant dense<0xFF800000> : vector<8xf32>
    %69 = vector.multi_reduction <maximumf>, %66, %cst_34 [1] : vector<8x8xf32> to vector<8xf32>
    %70 = vector.shape_cast %69 : vector<8xf32> to vector<8x1xf32>
    %71 = arith.maximumf %68, %70 : vector<8x1xf32>
    %72 = arith.subf %68, %71 : vector<8x1xf32>
    %73 = math.exp %72 : vector<8x1xf32>
    %74 = vector.broadcast %71 : vector<8x1xf32> to vector<8x8xf32>
    %75 = arith.subf %66, %74 : vector<8x8xf32>
    %76 = math.exp %75 : vector<8x8xf32>
    %c1_35 = arith.constant 1 : index
    %c0_36 = arith.constant 0 : index
    %c0_37 = arith.constant 0 : index
    %77 = vector.load %arg6[%c1_35, %c0_36, %c0_37] : memref<4x8x1xf32, #tpu.memory_space<vmem>>, vector<1x8x1xf32>
    %78 = vector.shape_cast %77 : vector<1x8x1xf32> to vector<8x1xf32>
    %79 = arith.mulf %73, %78 : vector<8x1xf32>
    %cst_38 = arith.constant dense<0.000000e+00> : vector<8xf32>
    %80 = vector.multi_reduction <add>, %76, %cst_38 [1] : vector<8x8xf32> to vector<8xf32>
    %81 = vector.shape_cast %80 : vector<8xf32> to vector<8x1xf32>
    %82 = arith.addf %79, %81 : vector<8x1xf32>
    %c1_39 = arith.constant 1 : index
    %c0_40 = arith.constant 0 : index
    %c0_41 = arith.constant 0 : index
    %83 = vector.load %arg6[%c1_39, %c0_40, %c0_41] : memref<4x8x1xf32, #tpu.memory_space<vmem>>, vector<1x8x1xf32>
    %84 = vector.shape_cast %83 : vector<1x8x1xf32> to vector<8x1xf32>
    %85 = vector.shape_cast %82 : vector<8x1xf32> to vector<1x8x1xf32>
    tpu.vector_store %arg6[%c1_39, %c0_40, %c0_41], %85 {strides = array<i32>} : memref<4x8x1xf32, #tpu.memory_space<vmem>>, vector<1x8x1xf32>,
    %c1_42 = arith.constant 1 : index
    %c0_43 = arith.constant 0 : index
    %c0_44 = arith.constant 0 : index
    %86 = vector.load %arg7[%c1_42, %c0_43, %c0_44] : memref<4x8x8xf32, #tpu.memory_space<vmem>>, vector<1x8x8xf32>
    %87 = vector.shape_cast %86 : vector<1x8x8xf32> to vector<8x8xf32>
    %88 = vector.broadcast %73 : vector<8x1xf32> to vector<8x8xf32>
    %89 = arith.mulf %88, %87 : vector<8x8xf32>
    %90 = arith.truncf %76 : vector<8x8xf32> to vector<8x8xbf16>
    %cst_45 = arith.constant dense<0.000000e+00> : vector<8x8xf32>
    %91 = tpu.matmul %90, %61, %cst_45 {dimension_numbers = #tpu.dot_dimension_numbers<[1], [0], [0], [1], [0, 0, 1, 1], [], []>} : vector<8x8xbf16>, vector<8x8xbf16>, vector<8x8xf32> -> vector<8x8xf32>
    %92 = arith.addf %89, %91 : vector<8x8xf32>
    %c1_46 = arith.constant 1 : index
    %c0_47 = arith.constant 0 : index
    %c0_48 = arith.constant 0 : index
    %93 = vector.load %arg7[%c1_46, %c0_47, %c0_48] : memref<4x8x8xf32, #tpu.memory_space<vmem>>, vector<1x8x8xf32>
    %94 = vector.shape_cast %93 : vector<1x8x8xf32> to vector<8x8xf32>
    %95 = vector.shape_cast %92 : vector<8x8xf32> to vector<1x8x8xf32>
    tpu.vector_store %arg7[%c1_46, %c0_47, %c0_48], %95 {strides = array<i32>} : memref<4x8x8xf32, #tpu.memory_space<vmem>>, vector<1x8x8xf32>,
    %c1_49 = arith.constant 1 : index
    %c0_50 = arith.constant 0 : index
    %c0_51 = arith.constant 0 : index
    %96 = vector.load %arg5[%c1_49, %c0_50, %c0_51] : memref<4x8x1xf32, #tpu.memory_space<vmem>>, vector<1x8x1xf32>
    %97 = vector.shape_cast %96 : vector<1x8x1xf32> to vector<8x1xf32>
    %98 = vector.shape_cast %71 : vector<8x1xf32> to vector<1x8x1xf32>
    tpu.vector_store %arg5[%c1_49, %c0_50, %c0_51], %98 {strides = array<i32>} : memref<4x8x1xf32, #tpu.memory_space<vmem>>, vector<1x8x1xf32>,
    %99 = vector.extract_strided_slice %4 {offsets = [0, 16], sizes = [8, 8], strides = [1, 1]} : vector<8x96xf32> to vector<8x8xf32>
    %100 = arith.truncf %99 : vector<8x8xf32> to vector<8x8xbf16>
    %101 = vector.extract_strided_slice %6 {offsets = [0, 48], sizes = [8, 8], strides = [1, 1]} : vector<8x96xf32> to vector<8x8xf32>
    %102 = arith.truncf %101 : vector<8x8xf32> to vector<8x8xbf16>
    %103 = vector.extract_strided_slice %6 {offsets = [0, 80], sizes = [8, 8], strides = [1, 1]} : vector<8x96xf32> to vector<8x8xf32>
    %104 = arith.truncf %103 : vector<8x8xf32> to vector<8x8xbf16>
    %cst_52 = arith.constant dense<0.000000e+00> : vector<8x8xf32>
    %105 = tpu.matmul %100, %102, %cst_52 {dimension_numbers = #tpu.dot_dimension_numbers<[1], [1], [0], [0], [0, 0, 1, 0], [], []>} : vector<8x8xbf16>, vector<8x8xbf16>, vector<8x8xf32> -> vector<8x8xf32>
    %cst_53 = arith.constant 0.353553385 : f32
    %106 = vector.broadcast %cst_53 : f32 to vector<8x8xf32>
    %107 = arith.mulf %105, %106 : vector<8x8xf32>
    %cst_54 = arith.constant 0xFF800000 : f32
    %108 = vector.broadcast %cst_54 : f32 to vector<8x8xf32>
    %109 = arith.select %12, %107, %108 : vector<8x8xi1>, vector<8x8xf32>
    %c2 = arith.constant 2 : index
    %c0_55 = arith.constant 0 : index
    %c0_56 = arith.constant 0 : index
    %110 = vector.load %arg5[%c2, %c0_55, %c0_56] : memref<4x8x1xf32, #tpu.memory_space<vmem>>, vector<1x8x1xf32>
    %111 = vector.shape_cast %110 : vector<1x8x1xf32> to vector<8x1xf32>
    %cst_57 = arith.constant dense<0xFF800000> : vector<8xf32>
    %112 = vector.multi_reduction <maximumf>, %109, %cst_57 [1] : vector<8x8xf32> to vector<8xf32>
    %113 = vector.shape_cast %112 : vector<8xf32> to vector<8x1xf32>
    %114 = arith.maximumf %111, %113 : vector<8x1xf32>
    %115 = arith.subf %111, %114 : vector<8x1xf32>
    %116 = math.exp %115 : vector<8x1xf32>
    %117 = vector.broadcast %114 : vector<8x1xf32> to vector<8x8xf32>
    %118 = arith.subf %109, %117 : vector<8x8xf32>
    %119 = math.exp %118 : vector<8x8xf32>
    %c2_58 = arith.constant 2 : index
    %c0_59 = arith.constant 0 : index
    %c0_60 = arith.constant 0 : index
    %120 = vector.load %arg6[%c2_58, %c0_59, %c0_60] : memref<4x8x1xf32, #tpu.memory_space<vmem>>, vector<1x8x1xf32>
    %121 = vector.shape_cast %120 : vector<1x8x1xf32> to vector<8x1xf32>
    %122 = arith.mulf %116, %121 : vector<8x1xf32>
    %cst_61 = arith.constant dense<0.000000e+00> : vector<8xf32>
    %123 = vector.multi_reduction <add>, %119, %cst_61 [1] : vector<8x8xf32> to vector<8xf32>
    %124 = vector.shape_cast %123 : vector<8xf32> to vector<8x1xf32>
    %125 = arith.addf %122, %124 : vector<8x1xf32>
    %c2_62 = arith.constant 2 : index
    %c0_63 = arith.constant 0 : index
    %c0_64 = arith.constant 0 : index
    %126 = vector.load %arg6[%c2_62, %c0_63, %c0_64] : memref<4x8x1xf32, #tpu.memory_space<vmem>>, vector<1x8x1xf32>
    %127 = vector.shape_cast %126 : vector<1x8x1xf32> to vector<8x1xf32>
    %128 = vector.shape_cast %125 : vector<8x1xf32> to vector<1x8x1xf32>
    tpu.vector_store %arg6[%c2_62, %c0_63, %c0_64], %128 {strides = array<i32>} : memref<4x8x1xf32, #tpu.memory_space<vmem>>, vector<1x8x1xf32>,
    %c2_65 = arith.constant 2 : index
    %c0_66 = arith.constant 0 : index
    %c0_67 = arith.constant 0 : index
    %129 = vector.load %arg7[%c2_65, %c0_66, %c0_67] : memref<4x8x8xf32, #tpu.memory_space<vmem>>, vector<1x8x8xf32>
    %130 = vector.shape_cast %129 : vector<1x8x8xf32> to vector<8x8xf32>
    %131 = vector.broadcast %116 : vector<8x1xf32> to vector<8x8xf32>
    %132 = arith.mulf %131, %130 : vector<8x8xf32>
    %133 = arith.truncf %119 : vector<8x8xf32> to vector<8x8xbf16>
    %cst_68 = arith.constant dense<0.000000e+00> : vector<8x8xf32>
    %134 = tpu.matmul %133, %104, %cst_68 {dimension_numbers = #tpu.dot_dimension_numbers<[1], [0], [0], [1], [0, 0, 1, 1], [], []>} : vector<8x8xbf16>, vector<8x8xbf16>, vector<8x8xf32> -> vector<8x8xf32>
    %135 = arith.addf %132, %134 : vector<8x8xf32>
    %c2_69 = arith.constant 2 : index
    %c0_70 = arith.constant 0 : index
    %c0_71 = arith.constant 0 : index
    %136 = vector.load %arg7[%c2_69, %c0_70, %c0_71] : memref<4x8x8xf32, #tpu.memory_space<vmem>>, vector<1x8x8xf32>
    %137 = vector.shape_cast %136 : vector<1x8x8xf32> to vector<8x8xf32>
    %138 = vector.shape_cast %135 : vector<8x8xf32> to vector<1x8x8xf32>
    tpu.vector_store %arg7[%c2_69, %c0_70, %c0_71], %138 {strides = array<i32>} : memref<4x8x8xf32, #tpu.memory_space<vmem>>, vector<1x8x8xf32>,
    %c2_72 = arith.constant 2 : index
    %c0_73 = arith.constant 0 : index
    %c0_74 = arith.constant 0 : index
    %139 = vector.load %arg5[%c2_72, %c0_73, %c0_74] : memref<4x8x1xf32, #tpu.memory_space<vmem>>, vector<1x8x1xf32>
    %140 = vector.shape_cast %139 : vector<1x8x1xf32> to vector<8x1xf32>
    %141 = vector.shape_cast %114 : vector<8x1xf32> to vector<1x8x1xf32>
    tpu.vector_store %arg5[%c2_72, %c0_73, %c0_74], %141 {strides = array<i32>} : memref<4x8x1xf32, #tpu.memory_space<vmem>>, vector<1x8x1xf32>,
    %142 = vector.extract_strided_slice %4 {offsets = [0, 24], sizes = [8, 8], strides = [1, 1]} : vector<8x96xf32> to vector<8x8xf32>
    %143 = arith.truncf %142 : vector<8x8xf32> to vector<8x8xbf16>
    %144 = vector.extract_strided_slice %6 {offsets = [0, 56], sizes = [8, 8], strides = [1, 1]} : vector<8x96xf32> to vector<8x8xf32>
    %145 = arith.truncf %144 : vector<8x8xf32> to vector<8x8xbf16>
    %146 = vector.extract_strided_slice %6 {offsets = [0, 88], sizes = [8, 8], strides = [1, 1]} : vector<8x96xf32> to vector<8x8xf32>
    %147 = arith.truncf %146 : vector<8x8xf32> to vector<8x8xbf16>
    %cst_75 = arith.constant dense<0.000000e+00> : vector<8x8xf32>
    %148 = tpu.matmul %143, %145, %cst_75 {dimension_numbers = #tpu.dot_dimension_numbers<[1], [1], [0], [0], [0, 0, 1, 0], [], []>} : vector<8x8xbf16>, vector<8x8xbf16>, vector<8x8xf32> -> vector<8x8xf32>
    %cst_76 = arith.constant 0.353553385 : f32
    %149 = vector.broadcast %cst_76 : f32 to vector<8x8xf32>
    %150 = arith.mulf %148, %149 : vector<8x8xf32>
    %cst_77 = arith.constant 0xFF800000 : f32
    %151 = vector.broadcast %cst_77 : f32 to vector<8x8xf32>
    %152 = arith.select %12, %150, %151 : vector<8x8xi1>, vector<8x8xf32>
    %c3 = arith.constant 3 : index
    %c0_78 = arith.constant 0 : index
    %c0_79 = arith.constant 0 : index
    %153 = vector.load %arg5[%c3, %c0_78, %c0_79] : memref<4x8x1xf32, #tpu.memory_space<vmem>>, vector<1x8x1xf32>
    %154 = vector.shape_cast %153 : vector<1x8x1xf32> to vector<8x1xf32>
    %cst_80 = arith.constant dense<0xFF800000> : vector<8xf32>
    %155 = vector.multi_reduction <maximumf>, %152, %cst_80 [1] : vector<8x8xf32> to vector<8xf32>
    %156 = vector.shape_cast %155 : vector<8xf32> to vector<8x1xf32>
    %157 = arith.maximumf %154, %156 : vector<8x1xf32>
    %158 = arith.subf %154, %157 : vector<8x1xf32>
    %159 = math.exp %158 : vector<8x1xf32>
    %160 = vector.broadcast %157 : vector<8x1xf32> to vector<8x8xf32>
    %161 = arith.subf %152, %160 : vector<8x8xf32>
    %162 = math.exp %161 : vector<8x8xf32>
    %c3_81 = arith.constant 3 : index
    %c0_82 = arith.constant 0 : index
    %c0_83 = arith.constant 0 : index
    %163 = vector.load %arg6[%c3_81, %c0_82, %c0_83] : memref<4x8x1xf32, #tpu.memory_space<vmem>>, vector<1x8x1xf32>
    %164 = vector.shape_cast %163 : vector<1x8x1xf32> to vector<8x1xf32>
    %165 = arith.mulf %159, %164 : vector<8x1xf32>
    %cst_84 = arith.constant dense<0.000000e+00> : vector<8xf32>
    %166 = vector.multi_reduction <add>, %162, %cst_84 [1] : vector<8x8xf32> to vector<8xf32>
    %167 = vector.shape_cast %166 : vector<8xf32> to vector<8x1xf32>
    %168 = arith.addf %165, %167 : vector<8x1xf32>
    %c3_85 = arith.constant 3 : index
    %c0_86 = arith.constant 0 : index
    %c0_87 = arith.constant 0 : index
    %169 = vector.load %arg6[%c3_85, %c0_86, %c0_87] : memref<4x8x1xf32, #tpu.memory_space<vmem>>, vector<1x8x1xf32>
    %170 = vector.shape_cast %169 : vector<1x8x1xf32> to vector<8x1xf32>
    %171 = vector.shape_cast %168 : vector<8x1xf32> to vector<1x8x1xf32>
    tpu.vector_store %arg6[%c3_85, %c0_86, %c0_87], %171 {strides = array<i32>} : memref<4x8x1xf32, #tpu.memory_space<vmem>>, vector<1x8x1xf32>,
    %c3_88 = arith.constant 3 : index
    %c0_89 = arith.constant 0 : index
    %c0_90 = arith.constant 0 : index
    %172 = vector.load %arg7[%c3_88, %c0_89, %c0_90] : memref<4x8x8xf32, #tpu.memory_space<vmem>>, vector<1x8x8xf32>
    %173 = vector.shape_cast %172 : vector<1x8x8xf32> to vector<8x8xf32>
    %174 = vector.broadcast %159 : vector<8x1xf32> to vector<8x8xf32>
    %175 = arith.mulf %174, %173 : vector<8x8xf32>
    %176 = arith.truncf %162 : vector<8x8xf32> to vector<8x8xbf16>
    %cst_91 = arith.constant dense<0.000000e+00> : vector<8x8xf32>
    %177 = tpu.matmul %176, %147, %cst_91 {dimension_numbers = #tpu.dot_dimension_numbers<[1], [0], [0], [1], [0, 0, 1, 1], [], []>} : vector<8x8xbf16>, vector<8x8xbf16>, vector<8x8xf32> -> vector<8x8xf32>
    %178 = arith.addf %175, %177 : vector<8x8xf32>
    %c3_92 = arith.constant 3 : index
    %c0_93 = arith.constant 0 : index
    %c0_94 = arith.constant 0 : index
    %179 = vector.load %arg7[%c3_92, %c0_93, %c0_94] : memref<4x8x8xf32, #tpu.memory_space<vmem>>, vector<1x8x8xf32>
    %180 = vector.shape_cast %179 : vector<1x8x8xf32> to vector<8x8xf32>
    %181 = vector.shape_cast %178 : vector<8x8xf32> to vector<1x8x8xf32>
    tpu.vector_store %arg7[%c3_92, %c0_93, %c0_94], %181 {strides = array<i32>} : memref<4x8x8xf32, #tpu.memory_space<vmem>>, vector<1x8x8xf32>,
    %c3_95 = arith.constant 3 : index
    %c0_96 = arith.constant 0 : index
    %c0_97 = arith.constant 0 : index
    %182 = vector.load %arg5[%c3_95, %c0_96, %c0_97] : memref<4x8x1xf32, #tpu.memory_space<vmem>>, vector<1x8x1xf32>
    %183 = vector.shape_cast %182 : vector<1x8x1xf32> to vector<8x1xf32>
    %184 = vector.shape_cast %157 : vector<8x1xf32> to vector<1x8x1xf32>
    tpu.vector_store %arg5[%c3_95, %c0_96, %c0_97], %184 {strides = array<i32>} : memref<4x8x1xf32, #tpu.memory_space<vmem>>, vector<1x8x1xf32>,
    %c0_i32_98 = arith.constant 0 : i32
    %185 = arith.cmpi eq, %arg1, %c0_i32_98 : i32
    %186 = arith.extui %185 : i1 to i32
    %c0_i32_99 = arith.constant 0 : i32
    %187 = arith.cmpi ne, %186, %c0_i32_99 : i32
    scf.if %187 {
      %c0_100 = arith.constant 0 : index
      %c0_101 = arith.constant 0 : index
      %c0_102 = arith.constant 0 : index
      %188 = vector.load %arg7[%c0_100, %c0_101, %c0_102] : memref<4x8x8xf32, #tpu.memory_space<vmem>>, vector<1x8x8xf32>
      %189 = vector.shape_cast %188 : vector<1x8x8xf32> to vector<8x8xf32>
      %c0_103 = arith.constant 0 : index
      %c0_104 = arith.constant 0 : index
      %c0_105 = arith.constant 0 : index
      %190 = vector.load %arg6[%c0_103, %c0_104, %c0_105] : memref<4x8x1xf32, #tpu.memory_space<vmem>>, vector<1x8x1xf32>
      %191 = vector.shape_cast %190 : vector<1x8x1xf32> to vector<8x1xf32>
      %192 = tpu.reciprocal %191 {approx = true} : vector<8x1xf32> -> vector<8x1xf32>
      %193 = vector.broadcast %192 : vector<8x1xf32> to vector<8x8xf32>
      %194 = arith.mulf %189, %193 : vector<8x8xf32>
      %c1_106 = arith.constant 1 : index
      %c0_107 = arith.constant 0 : index
      %c0_108 = arith.constant 0 : index
      %195 = vector.load %arg7[%c1_106, %c0_107, %c0_108] : memref<4x8x8xf32, #tpu.memory_space<vmem>>, vector<1x8x8xf32>
      %196 = vector.shape_cast %195 : vector<1x8x8xf32> to vector<8x8xf32>
      %c1_109 = arith.constant 1 : index
      %c0_110 = arith.constant 0 : index
      %c0_111 = arith.constant 0 : index
      %197 = vector.load %arg6[%c1_109, %c0_110, %c0_111] : memref<4x8x1xf32, #tpu.memory_space<vmem>>, vector<1x8x1xf32>
      %198 = vector.shape_cast %197 : vector<1x8x1xf32> to vector<8x1xf32>
      %199 = tpu.reciprocal %198 {approx = true} : vector<8x1xf32> -> vector<8x1xf32>
      %200 = vector.broadcast %199 : vector<8x1xf32> to vector<8x8xf32>
      %201 = arith.mulf %196, %200 : vector<8x8xf32>
      %c2_112 = arith.constant 2 : index
      %c0_113 = arith.constant 0 : index
      %c0_114 = arith.constant 0 : index
      %202 = vector.load %arg7[%c2_112, %c0_113, %c0_114] : memref<4x8x8xf32, #tpu.memory_space<vmem>>, vector<1x8x8xf32>
      %203 = vector.shape_cast %202 : vector<1x8x8xf32> to vector<8x8xf32>
      %c2_115 = arith.constant 2 : index
      %c0_116 = arith.constant 0 : index
      %c0_117 = arith.constant 0 : index
      %204 = vector.load %arg6[%c2_115, %c0_116, %c0_117] : memref<4x8x1xf32, #tpu.memory_space<vmem>>, vector<1x8x1xf32>
      %205 = vector.shape_cast %204 : vector<1x8x1xf32> to vector<8x1xf32>
      %206 = tpu.reciprocal %205 {approx = true} : vector<8x1xf32> -> vector<8x1xf32>
      %207 = vector.broadcast %206 : vector<8x1xf32> to vector<8x8xf32>
      %208 = arith.mulf %203, %207 : vector<8x8xf32>
      %c3_118 = arith.constant 3 : index
      %c0_119 = arith.constant 0 : index
      %c0_120 = arith.constant 0 : index
      %209 = vector.load %arg7[%c3_118, %c0_119, %c0_120] : memref<4x8x8xf32, #tpu.memory_space<vmem>>, vector<1x8x8xf32>
      %210 = vector.shape_cast %209 : vector<1x8x8xf32> to vector<8x8xf32>
      %c3_121 = arith.constant 3 : index
      %c0_122 = arith.constant 0 : index
      %c0_123 = arith.constant 0 : index
      %211 = vector.load %arg6[%c3_121, %c0_122, %c0_123] : memref<4x8x1xf32, #tpu.memory_space<vmem>>, vector<1x8x1xf32>
      %212 = vector.shape_cast %211 : vector<1x8x1xf32> to vector<8x1xf32>
      %213 = tpu.reciprocal %212 {approx = true} : vector<8x1xf32> -> vector<8x1xf32>
      %214 = vector.broadcast %213 : vector<8x1xf32> to vector<8x8xf32>
      %215 = arith.mulf %210, %214 : vector<8x8xf32>
      %216 = tpu.concatenate %194, %201, %208, %215 in 1 : vector<8x8xf32>, vector<8x8xf32>, vector<8x8xf32>, vector<8x8xf32> -> vector<8x32xf32>
      %c0_124 = arith.constant 0 : index
      %c0_125 = arith.constant 0 : index
      %c0_126 = arith.constant 0 : index
      %217 = vector.load %arg4[%c0_124, %c0_125, %c0_126] : memref<1x8x32xf32, #tpu.memory_space<vmem>>, vector<1x8x32xf32>
      %218 = vector.shape_cast %217 : vector<1x8x32xf32> to vector<8x32xf32>
      %219 = vector.shape_cast %216 : vector<8x32xf32> to vector<1x8x32xf32>
      tpu.vector_store %arg4[%c0_124, %c0_125, %c0_126], %219 {strides = array<i32>} : memref<1x8x32xf32, #tpu.memory_space<vmem>>, vector<1x8x32xf32>,
    } else {
    }
    return
  }
  func.func @transform_0(%arg0: i32, %arg1: i32) -> (i32, i32, i32) {
    %c0_i32 = arith.constant 0 : i32
    %c0_i32_0 = arith.constant 0 : i32
    %c0_i32_1 = arith.constant 0 : i32
    return %arg0, %c0_i32, %c0_i32_0 : i32, i32, i32
  }
  func.func @transform_1(%arg0: i32, %arg1: i32) -> (i32, i32, i32) {
    %c0_i32 = arith.constant 0 : i32
    %c0_i32_0 = arith.constant 0 : i32
    return %arg0, %arg1, %c0_i32 : i32, i32, i32
  }
  func.func @transform_2(%arg0: i32, %arg1: i32) -> (i32, i32, i32) {
    %c0_i32 = arith.constant 0 : i32
    %c0_i32_0 = arith.constant 0 : i32
    %c0_i32_1 = arith.constant 0 : i32
    return %arg0, %c0_i32, %c0_i32_0 : i32, i32, i32
  }
}

module attributes {stable_mosaic.version = 11 : i64} {
  func.func @_matmul_residual_kernel(%arg0: i32, %arg1: i32, %arg2: i32, %arg3: memref<16x128xf32, #tpu.memory_space<vmem>>, %arg4: memref<128x32xbf16, #tpu.memory_space<vmem>>, %arg5: memref<1x32xf32, #tpu.memory_space<vmem>>, %arg6: memref<16x32xf32, #tpu.memory_space<vmem>>, %arg7: memref<16x32xf32, #tpu.memory_space<vmem>>, %arg8: memref<16x32xf32, #tpu.memory_space<vmem>>) attributes {dimension_semantics = [#tpu.dimension_semantics<parallel>, #tpu.dimension_semantics<parallel>, #tpu.dimension_semantics<arbitrary>], iteration_bounds = array<i64: 1, 1, 1>, scalar_prefetch = 0 : i64, scratch_operands = 1 : i64, tpu.core_type = #tpu.core_type<tc>, window_params = [{transform_indices = @transform_0, window_bounds = array<i64: 16, 128>}, {transform_indices = @transform_1, window_bounds = array<i64: 128, 32>}, {transform_indices = @transform_2, window_bounds = array<i64: 1, 32>}, {transform_indices = @transform_3, window_bounds = array<i64: 16, 32>}, {transform_indices = @transform_4, window_bounds = array<i64: 16, 32>}]} {
    %c0_i32 = arith.constant 0 : i32
    %0 = arith.cmpi eq, %arg2, %c0_i32 : i32
    %1 = arith.extui %0 : i1 to i32
    %c0_i32_0 = arith.constant 0 : i32
    %2 = arith.cmpi ne, %1, %c0_i32_0 : i32
    scf.if %2 {
      %cst_10 = arith.constant 0.000000e+00 : f32
      %13 = vector.broadcast %cst_10 : f32 to vector<16x32xf32>
      %c0_11 = arith.constant 0 : index
      %c0_12 = arith.constant 0 : index
      %14 = vector.load %arg8[%c0_11, %c0_12] : memref<16x32xf32, #tpu.memory_space<vmem>>, vector<16x32xf32>
      tpu.vector_store %arg8[%c0_11, %c0_12], %13 {strides = array<i32>} : memref<16x32xf32, #tpu.memory_space<vmem>>, vector<16x32xf32>,
    } else {
    }
    %c0 = arith.constant 0 : index
    %c0_1 = arith.constant 0 : index
    %3 = vector.load %arg8[%c0, %c0_1] : memref<16x32xf32, #tpu.memory_space<vmem>>, vector<16x32xf32>
    %c0_2 = arith.constant 0 : index
    %c0_3 = arith.constant 0 : index
    %4 = vector.load %arg3[%c0_2, %c0_3] : memref<16x128xf32, #tpu.memory_space<vmem>>, vector<16x128xf32>
    %5 = arith.truncf %4 : vector<16x128xf32> to vector<16x128xbf16>
    %c0_4 = arith.constant 0 : index
    %c0_5 = arith.constant 0 : index
    %6 = vector.load %arg4[%c0_4, %c0_5] : memref<128x32xbf16, #tpu.memory_space<vmem>>, vector<128x32xbf16>
    %cst = arith.constant dense<0.000000e+00> : vector<16x32xf32>
    %7 = tpu.matmul %5, %6, %cst {dimension_numbers = #tpu.dot_dimension_numbers<[1], [0], [0], [1], [0, 0, 1, 1], [], []>} : vector<16x128xbf16>, vector<128x32xbf16>, vector<16x32xf32> -> vector<16x32xf32>
    %8 = arith.addf %3, %7 : vector<16x32xf32>
    %c0_6 = arith.constant 0 : index
    %c0_7 = arith.constant 0 : index
    %9 = vector.load %arg8[%c0_6, %c0_7] : memref<16x32xf32, #tpu.memory_space<vmem>>, vector<16x32xf32>
    tpu.vector_store %arg8[%c0_6, %c0_7], %8 {strides = array<i32>} : memref<16x32xf32, #tpu.memory_space<vmem>>, vector<16x32xf32>,
    %c0_i32_8 = arith.constant 0 : i32
    %10 = arith.cmpi eq, %arg2, %c0_i32_8 : i32
    %11 = arith.extui %10 : i1 to i32
    %c0_i32_9 = arith.constant 0 : i32
    %12 = arith.cmpi ne, %11, %c0_i32_9 : i32
    scf.if %12 {
      %c0_10 = arith.constant 0 : index
      %c0_11 = arith.constant 0 : index
      %13 = vector.load %arg8[%c0_10, %c0_11] : memref<16x32xf32, #tpu.memory_space<vmem>>, vector<16x32xf32>
      %c0_12 = arith.constant 0 : index
      %c0_13 = arith.constant 0 : index
      %14 = vector.load %arg5[%c0_12, %c0_13] : memref<1x32xf32, #tpu.memory_space<vmem>>, vector<1x32xf32>
      %15 = vector.broadcast %14 : vector<1x32xf32> to vector<16x32xf32>
      %16 = arith.addf %13, %15 : vector<16x32xf32>
      %c0_14 = arith.constant 0 : index
      %c0_15 = arith.constant 0 : index
      %17 = vector.load %arg6[%c0_14, %c0_15] : memref<16x32xf32, #tpu.memory_space<vmem>>, vector<16x32xf32>
      %18 = arith.addf %16, %17 : vector<16x32xf32>
      %c0_16 = arith.constant 0 : index
      %c0_17 = arith.constant 0 : index
      %19 = vector.load %arg7[%c0_16, %c0_17] : memref<16x32xf32, #tpu.memory_space<vmem>>, vector<16x32xf32>
      tpu.vector_store %arg7[%c0_16, %c0_17], %18 {strides = array<i32>} : memref<16x32xf32, #tpu.memory_space<vmem>>, vector<16x32xf32>,
    } else {
    }
    return
  }
  func.func @transform_0(%arg0: i32, %arg1: i32, %arg2: i32) -> (i32, i32) {
    %c0_i32 = arith.constant 0 : i32
    return %arg0, %arg2 : i32, i32
  }
  func.func @transform_1(%arg0: i32, %arg1: i32, %arg2: i32) -> (i32, i32) {
    %c0_i32 = arith.constant 0 : i32
    return %arg2, %arg1 : i32, i32
  }
  func.func @transform_2(%arg0: i32, %arg1: i32, %arg2: i32) -> (i32, i32) {
    %c0_i32 = arith.constant 0 : i32
    %c0_i32_0 = arith.constant 0 : i32
    return %c0_i32, %arg1 : i32, i32
  }
  func.func @transform_3(%arg0: i32, %arg1: i32, %arg2: i32) -> (i32, i32) {
    %c0_i32 = arith.constant 0 : i32
    return %arg0, %arg1 : i32, i32
  }
  func.func @transform_4(%arg0: i32, %arg1: i32, %arg2: i32) -> (i32, i32) {
    %c0_i32 = arith.constant 0 : i32
    return %arg0, %arg1 : i32, i32
  }
}

module attributes {stable_mosaic.version = 11 : i64} {
  func.func @_ln_matmul_kernel(%arg0: i32, %arg1: i32, %arg2: memref<16x32xf32, #tpu.memory_space<vmem>>, %arg3: memref<1x32xf32, #tpu.memory_space<vmem>>, %arg4: memref<1x32xf32, #tpu.memory_space<vmem>>, %arg5: memref<32x128xbf16, #tpu.memory_space<vmem>>, %arg6: memref<1x128xf32, #tpu.memory_space<vmem>>, %arg7: memref<16x128xf32, #tpu.memory_space<vmem>>) attributes {dimension_semantics = [#tpu.dimension_semantics<parallel>, #tpu.dimension_semantics<parallel>], iteration_bounds = array<i64: 1, 1>, scalar_prefetch = 0 : i64, scratch_operands = 0 : i64, tpu.core_type = #tpu.core_type<tc>, window_params = [{transform_indices = @transform_0, window_bounds = array<i64: 16, 32>}, {pipeline_mode = #tpu.pipeline_mode<synchronous>, transform_indices = @transform_1, window_bounds = array<i64: 1, 32>}, {pipeline_mode = #tpu.pipeline_mode<synchronous>, transform_indices = @transform_2, window_bounds = array<i64: 1, 32>}, {transform_indices = @transform_3, window_bounds = array<i64: 32, 128>}, {transform_indices = @transform_4, window_bounds = array<i64: 1, 128>}, {transform_indices = @transform_5, window_bounds = array<i64: 16, 128>}]} {
    %c0 = arith.constant 0 : index
    %c0_0 = arith.constant 0 : index
    %0 = vector.load %arg2[%c0, %c0_0] : memref<16x32xf32, #tpu.memory_space<vmem>>, vector<16x32xf32>
    %cst = arith.constant dense<0.000000e+00> : vector<16xf32>
    %1 = vector.multi_reduction <add>, %0, %cst [1] : vector<16x32xf32> to vector<16xf32>
    %2 = vector.shape_cast %1 : vector<16xf32> to vector<16x1xf32>
    %cst_1 = arith.constant 3.200000e+01 : f32
    %3 = vector.broadcast %cst_1 : f32 to vector<16x1xf32>
    %4 = arith.divf %2, %3 : vector<16x1xf32>
    %5 = vector.broadcast %4 : vector<16x1xf32> to vector<16x32xf32>
    %6 = arith.subf %0, %5 : vector<16x32xf32>
    %7 = arith.mulf %6, %6 : vector<16x32xf32>
    %cst_2 = arith.constant dense<0.000000e+00> : vector<16xf32>
    %8 = vector.multi_reduction <add>, %7, %cst_2 [1] : vector<16x32xf32> to vector<16xf32>
    %9 = vector.shape_cast %8 : vector<16xf32> to vector<16x1xf32>
    %cst_3 = arith.constant 3.200000e+01 : f32
    %10 = vector.broadcast %cst_3 : f32 to vector<16x1xf32>
    %11 = arith.divf %9, %10 : vector<16x1xf32>
    %12 = vector.broadcast %4 : vector<16x1xf32> to vector<16x32xf32>
    %13 = arith.subf %0, %12 : vector<16x32xf32>
    %cst_4 = arith.constant 9.99999974E-6 : f32
    %14 = vector.broadcast %cst_4 : f32 to vector<16x1xf32>
    %15 = arith.addf %11, %14 : vector<16x1xf32>
    %16 = math.rsqrt %15 : vector<16x1xf32>
    %17 = vector.broadcast %16 : vector<16x1xf32> to vector<16x32xf32>
    %18 = arith.mulf %13, %17 : vector<16x32xf32>
    %c0_5 = arith.constant 0 : index
    %c0_6 = arith.constant 0 : index
    %19 = vector.load %arg3[%c0_5, %c0_6] : memref<1x32xf32, #tpu.memory_space<vmem>>, vector<1x32xf32>
    %20 = vector.broadcast %19 : vector<1x32xf32> to vector<16x32xf32>
    %21 = arith.mulf %18, %20 : vector<16x32xf32>
    %c0_7 = arith.constant 0 : index
    %c0_8 = arith.constant 0 : index
    %22 = vector.load %arg4[%c0_7, %c0_8] : memref<1x32xf32, #tpu.memory_space<vmem>>, vector<1x32xf32>
    %23 = vector.broadcast %22 : vector<1x32xf32> to vector<16x32xf32>
    %24 = arith.addf %21, %23 : vector<16x32xf32>
    %25 = arith.truncf %24 : vector<16x32xf32> to vector<16x32xbf16>
    %c0_9 = arith.constant 0 : index
    %c0_10 = arith.constant 0 : index
    %26 = vector.load %arg5[%c0_9, %c0_10] : memref<32x128xbf16, #tpu.memory_space<vmem>>, vector<32x128xbf16>
    %cst_11 = arith.constant dense<0.000000e+00> : vector<16x128xf32>
    %27 = tpu.matmul %25, %26, %cst_11 {dimension_numbers = #tpu.dot_dimension_numbers<[1], [0], [0], [1], [0, 0, 1, 1], [], []>} : vector<16x32xbf16>, vector<32x128xbf16>, vector<16x128xf32> -> vector<16x128xf32>
    %c0_12 = arith.constant 0 : index
    %c0_13 = arith.constant 0 : index
    %28 = vector.load %arg6[%c0_12, %c0_13] : memref<1x128xf32, #tpu.memory_space<vmem>>, vector<1x128xf32>
    %29 = vector.broadcast %28 : vector<1x128xf32> to vector<16x128xf32>
    %30 = arith.addf %27, %29 : vector<16x128xf32>
    %c0_14 = arith.constant 0 : index
    %c0_15 = arith.constant 0 : index
    %31 = vector.load %arg7[%c0_14, %c0_15] : memref<16x128xf32, #tpu.memory_space<vmem>>, vector<16x128xf32>
    tpu.vector_store %arg7[%c0_14, %c0_15], %30 {strides = array<i32>} : memref<16x128xf32, #tpu.memory_space<vmem>>, vector<16x128xf32>,
    return
  }
  func.func @transform_0(%arg0: i32, %arg1: i32) -> (i32, i32) {
    %c0_i32 = arith.constant 0 : i32
    %c0_i32_0 = arith.constant 0 : i32
    return %arg0, %c0_i32 : i32, i32
  }
  func.func @transform_1(%arg0: i32, %arg1: i32) -> (i32, i32) {
    %c0_i32 = arith.constant 0 : i32
    %c0_i32_0 = arith.constant 0 : i32
    %c0_i32_1 = arith.constant 0 : i32
    return %c0_i32, %c0_i32_0 : i32, i32
  }
  func.func @transform_2(%arg0: i32, %arg1: i32) -> (i32, i32) {
    %c0_i32 = arith.constant 0 : i32
    %c0_i32_0 = arith.constant 0 : i32
    %c0_i32_1 = arith.constant 0 : i32
    return %c0_i32, %c0_i32_0 : i32, i32
  }
  func.func @transform_3(%arg0: i32, %arg1: i32) -> (i32, i32) {
    %c0_i32 = arith.constant 0 : i32
    %c0_i32_0 = arith.constant 0 : i32
    return %c0_i32, %arg1 : i32, i32
  }
  func.func @transform_4(%arg0: i32, %arg1: i32) -> (i32, i32) {
    %c0_i32 = arith.constant 0 : i32
    %c0_i32_0 = arith.constant 0 : i32
    return %c0_i32, %arg1 : i32, i32
  }
  func.func @transform_5(%arg0: i32, %arg1: i32) -> (i32, i32) {
    %c0_i32 = arith.constant 0 : i32
    return %arg0, %arg1 : i32, i32
  }
}

</mosaic_0001>

<llo_original>
// kernel: _lambda_.13
$region0: #{_lambda_.13}
  #allocation0 [shape = 'u32[]', space=smem, size = 0x4, offset = 0x4, fixed_abs, tag = 'smem constant byte address 0x4 - core index']
  #allocation1 [shape = 'u32[144,128]{1,0:T(1,128)}', space=vmem, size = 0x12000, scoped, tag = 'internal scratch']
  #allocation2 [shape = 'f32[16,32]{1,0:T(8,128)}', space=vmem, size = 0x2000, scoped, tag = 'scratch operand']
  %s0 = inlined_call_operand.vmem [shape: f32[16,32], index: 0, kind: input, shape index: {}]
  %s1 = inlined_call_operand.vmem [shape: bf16[32,32], index: 1, kind: input, shape index: {}]
  %s2 = inlined_call_operand.vmem [shape: f32[1,32], index: 2, kind: input, shape index: {}]
  %s3 = inlined_call_operand.vmem [shape: f32[16,32], index: 3, kind: input, shape index: {}]
  %s4 = inlined_call_operand.vmem [shape: f32[16,32], index: 4, kind: output, shape index: {}]
  %s5 = sld [smem:[#allocation0]]
  $region34: #{_lambda_.13} parent=0
    _
  %s7 = ssub.s32 1, %s5
  %s8 = scalar_select 0, %s7, %s5
  // Predicated region
  $region2: #{_lambda_.13} parent=0 // pred_check
    _
  $region3: #{_lambda_.13} parent=0 // pred_check_branch
    %10 = sbr.rel (0) target = $region5
  $region4: #{_lambda_.13} parent=0 // pred_region
    _
  $region5: #{_lambda_.13} parent=0 // pred_fallthru
    _
  // Predicated region
  $region6: #{_lambda_.13} parent=0 // pred_check
    _
  $region7: #{_lambda_.13} parent=0 // pred_check_branch
    %12 = sbr.rel (0) target = $region9
  $region8: #{_lambda_.13} parent=0 // pred_region
    _
  $region9: #{_lambda_.13} parent=0 // pred_fallthru
    _
  // Predicated region
  $region10: #{_lambda_.13} parent=0 // pred_check
    _
  $region11: #{_lambda_.13} parent=0 // pred_check_branch
    %14 = sbr.rel (0) target = $region13
  $region12: #{_lambda_.13} parent=0 // pred_region
    _
  $region13: #{_lambda_.13} parent=0 // pred_fallthru
    _
  // Predicated region
  $region14: #{_lambda_.13} parent=0 // pred_check
    _
  $region15: #{_lambda_.13} parent=0 // pred_check_branch
    %16 = sbr.rel (0) target = $region17
  $region16: #{_lambda_.13} parent=0 // pred_region
    _
  $region17: #{_lambda_.13} parent=0 // pred_fallthru
    _
  %p18 = scmp.eq.s32.totalorder 0, 0
  // Predicated region
  $region18: #{_lambda_.13} parent=0 // pred_check
    %p19 = pneg %p18
  $region19: #{_lambda_.13} parent=0 // pred_check_branch
    %21 = sbr.rel (%p19) target = $region21
  $region20: #{_lambda_.13} parent=0 // pred_region
    %vm22 = vcmask 261120
    %23 = vst.msk [vmem:[#allocation2] sm:$0xff] %vm22, 0.0
    %24 = vst.msk [vmem:[#allocation2 + $0x8] sm:$0xff] %vm22, 0.0
  $region21: #{_lambda_.13} parent=0 // pred_fallthru
    _
  %v25 = vld [vmem:[#allocation2] sm:$0xff]
  %v26 = vld [vmem:[#allocation2 + $0x8] sm:$0xff]
  %v27 = vld [vmem:[%s0] sm:$0xff]
  %v28 = vld [vmem:[%s0 + $0x8] sm:$0xff]
  %v29 = vpack.c.bf16 %v28, %v27
  %v30 = vld [vmem:[%s1] sm:$0xf]
  %v31 = vld [vmem:[%s1 + $0x4] sm:$0xf]
  %v32 = vld [vmem:[%s1 + $0x8] sm:$0xf]
  %v33 = vld [vmem:[%s1 + $0xc] sm:$0xf]
  %v38 = vunpack.c.l.b16 %v30
  %v39 = vunpack.c.l.b16 %v31
  %v40 = vunpack.c.l.b16 %v32
  %v41 = vunpack.c.l.b16 %v33
  %v42 = vpack.c.b16 %v39, %v38
  %v43 = vpack.c.b16 %v41, %v40
  %vm46 = vcmask 261120
  %v48 = vsel %vm46, %v29, 0
  %50 = vmatprep.subr.bf16.mxu0 0
  %51 = vmatpush1.bf16.msra.mxu0 %v42
  %52 = vmatprep.subr.bf16.mxu0 0
  %53 = vmatpush1.bf16.msra.mxu0 %v43
  %54 = vmatprep.subr.bf16.mxu0 0
  %55 = vmatpush1.bf16.msra.mxu0 0
  %56 = vmatprep.subr.bf16.mxu0 0
  %57 = vmatpush1.bf16.msra.mxu0 0
  %58 = vmatprep.subr.bf16.mxu0 0
  %59 = vmatpush1.bf16.msra.mxu0 0
  %60 = vmatprep.subr.bf16.mxu0 0
  %61 = vmatpush1.bf16.msra.mxu0 0
  %62 = vmatprep.subr.bf16.mxu0 0
  %63 = vmatpush1.bf16.msra.mxu0 0
  %64 = vmatprep.subr.bf16.mxu0 0
  %65 = vmatpush1.bf16.msra.mxu0 0
  %66 = vmatprep.subr.bf16.mxu0 0
  %67 = vmatpush1.bf16.msra.mxu0 0
  %68 = vmatprep.subr.bf16.mxu0 0
  %69 = vmatpush1.bf16.msra.mxu0 0
  %70 = vmatprep.subr.bf16.mxu0 0
  %71 = vmatpush1.bf16.msra.mxu0 0
  %72 = vmatprep.subr.bf16.mxu0 0
  %73 = vmatpush1.bf16.msra.mxu0 0
  %74 = vmatprep.subr.bf16.mxu0 0
  %75 = vmatpush1.bf16.msra.mxu0 0
  %76 = vmatprep.subr.bf16.mxu0 0
  %77 = vmatpush1.bf16.msra.mxu0 0
  %78 = vmatprep.subr.bf16.mxu0 0
  %79 = vmatpush1.bf16.msra.mxu0 0
  %80 = vmatprep.subr.bf16.mxu0 0
  %81 = vmatpush1.bf16.msra.mxu0 0
  %82 = vmatprep.mubr.bf16.mxu0 0
  %83 = vmatmul.mubr.bf16.gmra.mrb[0].mxu0 %v48
  %v84 = vpop.f32.mrb[0].mxu0
  %v85 = vadd.f32 0.0, %v84
  %v86 = vpop.f32.mrb[0].mxu0
  %v87 = vpop.f32.mrb[0].mxu0
  %v88 = vadd.f32 0.0, %v87
  %v89 = vpop.f32.mrb[0].mxu0
  %90 = vdwg.mxu0
  %v91 = vadd.f32 %v25, %v85
  %v92 = vadd.f32 %v26, %v88
  %93 = vst.msk [vmem:[#allocation2] sm:$0xff] %vm46, %v91
  %94 = vst.msk [vmem:[#allocation2 + $0x8] sm:$0xff] %vm46, %v92
  // Predicated region
  $region22: #{_lambda_.13} parent=0 // pred_check
    %p95 = pneg %p18
  $region23: #{_lambda_.13} parent=0 // pred_check_branch
    %97 = sbr.rel (%p95) target = $region25
  $region24: #{_lambda_.13} parent=0 // pred_region
    %v98 = vld [vmem:[#allocation2] sm:$0xff]
    %v99 = vld [vmem:[#allocation2 + $0x8] sm:$0xff]
    %v100 = vld [vmem:[%s2] sm:$0x1]
    %v102 = vlaneseq
    %v103 = vshrl.u32 %v102, 7
    %v104 = vsub.s32 0, %v103
    %v105 = vrot.slane %v100, %v104
    %v107 = vadd.f32 %v98, %v105
    %v108 = vadd.f32 %v99, %v105
    %v109 = vld [vmem:[%s3] sm:$0xff]
    %v110 = vld [vmem:[%s3 + $0x8] sm:$0xff]
    %v111 = vadd.f32 %v107, %v109
    %v112 = vadd.f32 %v108, %v110
    %113 = vst.msk [vmem:[%s4] sm:$0xff] %vm46, %v111
    %114 = vst.msk [vmem:[%s4 + $0x8] sm:$0xff] %vm46, %v112
  $region25: #{_lambda_.13} parent=0 // pred_fallthru
    _
  // Predicated region
  $region26: #{_lambda_.13} parent=0 // pred_check
    _
  $region27: #{_lambda_.13} parent=0 // pred_check_branch
    %116 = sbr.rel (0) target = $region29
  $region28: #{_lambda_.13} parent=0 // pred_region
    _
  $region29: #{_lambda_.13} parent=0 // pred_fallthru
    _
  // Predicated region
  $region30: #{_lambda_.13} parent=0 // pred_check
    _
  $region31: #{_lambda_.13} parent=0 // pred_check_branch
    %118 = sbr.rel (0) target = $region33
  $region32: #{_lambda_.13} parent=0 // pred_region
    _
  $region33: #{_lambda_.13} parent=0 // pred_fallthru
    _

// kernel: _lambda_.11
$region0: #{_lambda_.11}
  #allocation0 [shape = 'u32[]', space=smem, size = 0x4, offset = 0x4, fixed_abs, tag = 'smem constant byte address 0x4 - core index']
  #allocation1 [shape = 'u32[144,128]{1,0:T(1,128)}', space=vmem, size = 0x12000, scoped, tag = 'internal scratch']
  %s0 = inlined_call_operand.vmem [shape: f32[16,32], index: 0, kind: input, shape index: {}]
  %s1 = inlined_call_operand.vmem [shape: f32[1,32], index: 1, kind: input, shape index: {}]
  %s2 = inlined_call_operand.vmem [shape: f32[1,32], index: 2, kind: input, shape index: {}]
  %s3 = inlined_call_operand.vmem [shape: bf16[32,96], index: 3, kind: input, shape index: {}]
  %s4 = inlined_call_operand.vmem [shape: f32[1,96], index: 4, kind: input, shape index: {}]
  %s5 = inlined_call_operand.vmem [shape: f32[16,96], index: 5, kind: output, shape index: {}]
  %s6 = sld [smem:[#allocation0]]
  $region30: #{_lambda_.11} parent=0
    _
  %s8 = ssub.s32 1, %s6
  %s9 = scalar_select 0, %s8, %s6
  // Predicated region
  $region2: #{_lambda_.11} parent=0 // pred_check
    _
  $region3: #{_lambda_.11} parent=0 // pred_check_branch
    %11 = sbr.rel (0) target = $region5
  $region4: #{_lambda_.11} parent=0 // pred_region
    _
  $region5: #{_lambda_.11} parent=0 // pred_fallthru
    _
  // Predicated region
  $region6: #{_lambda_.11} parent=0 // pred_check
    _
  $region7: #{_lambda_.11} parent=0 // pred_check_branch
    %13 = sbr.rel (0) target = $region9
  $region8: #{_lambda_.11} parent=0 // pred_region
    _
  $region9: #{_lambda_.11} parent=0 // pred_fallthru
    _
  // Predicated region
  $region10: #{_lambda_.11} parent=0 // pred_check
    _
  $region11: #{_lambda_.11} parent=0 // pred_check_branch
    %15 = sbr.rel (0) target = $region13
  $region12: #{_lambda_.11} parent=0 // pred_region
    _
  $region13: #{_lambda_.11} parent=0 // pred_fallthru
    _
  // Predicated region
  $region14: #{_lambda_.11} parent=0 // pred_check
    _
  $region15: #{_lambda_.11} parent=0 // pred_check_branch
    %17 = sbr.rel (0) target = $region17
  $region16: #{_lambda_.11} parent=0 // pred_region
    _
  $region17: #{_lambda_.11} parent=0 // pred_fallthru
    _
  // Predicated region
  $region18: #{_lambda_.11} parent=0 // pred_check
    _
  $region19: #{_lambda_.11} parent=0 // pred_check_branch
    %19 = sbr.rel (0) target = $region21
  $region20: #{_lambda_.11} parent=0 // pred_region
    _
  $region21: #{_lambda_.11} parent=0 // pred_fallthru
    _
  %v21 = vld [vmem:[%s0] sm:$0xff]
  %v22 = vld [vmem:[%s0 + $0x8] sm:$0xff]
  %vm23 = vcmask 261120
  %v24 = vsel %vm23, %v21, 0.0
  %25 = vadd.xlane.f32.xlu0 %v24
  %v26 = vpop.xlane.xlu0 %25
  %v27 = vsel %vm23, %v22, 0.0
  %28 = vadd.xlane.f32.xlu0 %v27
  %v29 = vpop.xlane.xlu0 %28
  %v30 = vrcp.pop 32.0
  %v31 = vmul.f32 %v26, %v30
  %v32 = vmul.f32 %v29, %v30
  %v33 = vsub.f32 %v21, %v31
  %v34 = vsub.f32 %v22, %v32
  %v35 = vmul.f32 %v33, %v33
  %v36 = vmul.f32 %v34, %v34
  %v37 = vsel %vm23, %v35, 0.0
  %38 = vadd.xlane.f32.xlu0 %v37
  %v39 = vpop.xlane.xlu0 %38
  %v40 = vsel %vm23, %v36, 0.0
  %41 = vadd.xlane.f32.xlu0 %v40
  %v42 = vpop.xlane.xlu0 %41
  %v43 = vmul.f32 %v39, %v30
  %v44 = vmul.f32 %v42, %v30
  %v45 = vadd.f32 %v43, 1e-05
  %v46 = vadd.f32 %v44, 1e-05
  %v47 = vrsqrt.pop %v45
  %v48 = vrsqrt.pop %v46
  %v49 = vmul.f32 %v33, %v47
  %v50 = vmul.f32 %v34, %v48
  %v51 = vld [vmem:[%s1] sm:$0x1]
  %v53 = vlaneseq
  %v54 = vshrl.u32 %v53, 7
  %v55 = vsub.s32 0, %v54
  %v56 = vrot.slane %v51, %v55
  %v58 = vmul.f32 %v49, %v56
  %v59 = vmul.f32 %v50, %v56
  %v60 = vld [vmem:[%s2] sm:$0x1]
  %v62 = vlaneseq
  %v63 = vshrl.u32 %v62, 7
  %v64 = vsub.s32 0, %v63
  %v65 = vrot.slane %v60, %v64
  %v67 = vadd.f32 %v58, %v65
  %v68 = vadd.f32 %v59, %v65
  %v69 = vpack.c.bf16 %v68, %v67
  %v70 = vld [vmem:[%s3] sm:$0xf]
  %v71 = vld [vmem:[%s3 + $0x4] sm:$0xf]
  %v72 = vld [vmem:[%s3 + $0x8] sm:$0xf]
  %v73 = vld [vmem:[%s3 + $0xc] sm:$0xf]
  %v74 = vld [vmem:[%s4] sm:$0x1]
  %v76 = vlaneseq
  %v77 = vshrl.u32 %v76, 7
  %v78 = vsub.s32 0, %v77
  %v79 = vrot.slane %v74, %v78
  %v85 = vunpack.c.l.b16 %v70
  %v86 = vunpack.c.l.b16 %v71
  %v87 = vunpack.c.l.b16 %v72
  %v88 = vunpack.c.l.b16 %v73
  %v89 = vpack.c.b16 %v86, %v85
  %v90 = vpack.c.b16 %v88, %v87
  %v94 = vsel %vm23, %v69, 0
  %96 = vmatprep.subr.bf16.mxu0 0
  %97 = vmatpush1.bf16.msra.mxu0 %v89
  %98 = vmatprep.subr.bf16.mxu0 0
  %99 = vmatpush1.bf16.msra.mxu0 %v90
  %100 = vmatprep.subr.bf16.mxu0 0
  %101 = vmatpush1.bf16.msra.mxu0 0
  %102 = vmatprep.subr.bf16.mxu0 0
  %103 = vmatpush1.bf16.msra.mxu0 0
  %104 = vmatprep.subr.bf16.mxu0 0
  %105 = vmatpush1.bf16.msra.mxu0 0
  %106 = vmatprep.subr.bf16.mxu0 0
  %107 = vmatpush1.bf16.msra.mxu0 0
  %108 = vmatprep.subr.bf16.mxu0 0
  %109 = vmatpush1.bf16.msra.mxu0 0
  %110 = vmatprep.subr.bf16.mxu0 0
  %111 = vmatpush1.bf16.msra.mxu0 0
  %112 = vmatprep.subr.bf16.mxu0 0
  %113 = vmatpush1.bf16.msra.mxu0 0
  %114 = vmatprep.subr.bf16.mxu0 0
  %115 = vmatpush1.bf16.msra.mxu0 0
  %116 = vmatprep.subr.bf16.mxu0 0
  %117 = vmatpush1.bf16.msra.mxu0 0
  %118 = vmatprep.subr.bf16.mxu0 0
  %119 = vmatpush1.bf16.msra.mxu0 0
  %120 = vmatprep.subr.bf16.mxu0 0
  %121 = vmatpush1.bf16.msra.mxu0 0
  %122 = vmatprep.subr.bf16.mxu0 0
  %123 = vmatpush1.bf16.msra.mxu0 0
  %124 = vmatprep.subr.bf16.mxu0 0
  %125 = vmatpush1.bf16.msra.mxu0 0
  %126 = vmatprep.subr.bf16.mxu0 0
  %127 = vmatpush1.bf16.msra.mxu0 0
  %128 = vmatprep.mubr.bf16.mxu0 0
  %129 = vmatmul.mubr.bf16.gmra.mrb[0].mxu0 %v94
  %v130 = vpop.f32.mrb[0].mxu0
  %v131 = vadd.f32 %v79, %v130
  %v132 = vpop.f32.mrb[0].mxu0
  %v133 = vpop.f32.mrb[0].mxu0
  %v134 = vadd.f32 %v79, %v133
  %v135 = vpop.f32.mrb[0].mxu0
  %136 = vdwg.mxu0
  %vm137 = vcmask 785408
  %138 = vst.msk [vmem:[%s5] sm:$0xff] %vm137, %v131
  %139 = vst.msk [vmem:[%s5 + $0x8] sm:$0xff] %vm137, %v134
  // Predicated region
  $region22: #{_lambda_.11} parent=0 // pred_check
    _
  $region23: #{_lambda_.11} parent=0 // pred_check_branch
    %141 = sbr.rel (0) target = $region25
  $region24: #{_lambda_.11} parent=0 // pred_region
    _
  $region25: #{_lambda_.11} parent=0 // pred_fallthru
    _
  // Predicated region
  $region26: #{_lambda_.11} parent=0 // pred_check
    _
  $region27: #{_lambda_.11} parent=0 // pred_check_branch
    %143 = sbr.rel (0) target = $region29
  $region28: #{_lambda_.11} parent=0 // pred_region
    _
  $region29: #{_lambda_.11} parent=0 // pred_fallthru
    _

// kernel: _lambda_.14
$region0: #{_lambda_.14}
  #allocation0 [shape = 'u32[]', space=smem, size = 0x4, offset = 0x4, fixed_abs, tag = 'smem constant byte address 0x4 - core index']
  #allocation1 [shape = 'u32[144,128]{1,0:T(1,128)}', space=vmem, size = 0x12000, scoped, tag = 'internal scratch']
  %s0 = inlined_call_operand.vmem [shape: f32[16,32], index: 0, kind: input, shape index: {}]
  %s1 = inlined_call_operand.vmem [shape: f32[1,32], index: 1, kind: input, shape index: {}]
  %s2 = inlined_call_operand.vmem [shape: f32[1,32], index: 2, kind: input, shape index: {}]
  %s3 = inlined_call_operand.vmem [shape: bf16[32,128], index: 3, kind: input, shape index: {}]
  %s4 = inlined_call_operand.vmem [shape: f32[1,128], index: 4, kind: input, shape index: {}]
  %s5 = inlined_call_operand.vmem [shape: f32[16,128], index: 5, kind: output, shape index: {}]
  %s6 = sld [smem:[#allocation0]]
  $region30: #{_lambda_.14} parent=0
    _
  %s8 = ssub.s32 1, %s6
  %s9 = scalar_select 0, %s8, %s6
  // Predicated region
  $region2: #{_lambda_.14} parent=0 // pred_check
    _
  $region3: #{_lambda_.14} parent=0 // pred_check_branch
    %11 = sbr.rel (0) target = $region5
  $region4: #{_lambda_.14} parent=0 // pred_region
    _
  $region5: #{_lambda_.14} parent=0 // pred_fallthru
    _
  // Predicated region
  $region6: #{_lambda_.14} parent=0 // pred_check
    _
  $region7: #{_lambda_.14} parent=0 // pred_check_branch
    %13 = sbr.rel (0) target = $region9
  $region8: #{_lambda_.14} parent=0 // pred_region
    _
  $region9: #{_lambda_.14} parent=0 // pred_fallthru
    _
  // Predicated region
  $region10: #{_lambda_.14} parent=0 // pred_check
    _
  $region11: #{_lambda_.14} parent=0 // pred_check_branch
    %15 = sbr.rel (0) target = $region13
  $region12: #{_lambda_.14} parent=0 // pred_region
    _
  $region13: #{_lambda_.14} parent=0 // pred_fallthru
    _
  // Predicated region
  $region14: #{_lambda_.14} parent=0 // pred_check
    _
  $region15: #{_lambda_.14} parent=0 // pred_check_branch
    %17 = sbr.rel (0) target = $region17
  $region16: #{_lambda_.14} parent=0 // pred_region
    _
  $region17: #{_lambda_.14} parent=0 // pred_fallthru
    _
  // Predicated region
  $region18: #{_lambda_.14} parent=0 // pred_check
    _
  $region19: #{_lambda_.14} parent=0 // pred_check_branch
    %19 = sbr.rel (0) target = $region21
  $region20: #{_lambda_.14} parent=0 // pred_region
    _
  $region21: #{_lambda_.14} parent=0 // pred_fallthru
    _
  %v21 = vld [vmem:[%s0] sm:$0xff]
  %v22 = vld [vmem:[%s0 + $0x8] sm:$0xff]
  %vm23 = vcmask 261120
  %v24 = vsel %vm23, %v21, 0.0
  %25 = vadd.xlane.f32.xlu0 %v24
  %v26 = vpop.xlane.xlu0 %25
  %v27 = vsel %vm23, %v22, 0.0
  %28 = vadd.xlane.f32.xlu0 %v27
  %v29 = vpop.xlane.xlu0 %28
  %v30 = vrcp.pop 32.0
  %v31 = vmul.f32 %v26, %v30
  %v32 = vmul.f32 %v29, %v30
  %v33 = vsub.f32 %v21, %v31
  %v34 = vsub.f32 %v22, %v32
  %v35 = vmul.f32 %v33, %v33
  %v36 = vmul.f32 %v34, %v34
  %v37 = vsel %vm23, %v35, 0.0
  %38 = vadd.xlane.f32.xlu0 %v37
  %v39 = vpop.xlane.xlu0 %38
  %v40 = vsel %vm23, %v36, 0.0
  %41 = vadd.xlane.f32.xlu0 %v40
  %v42 = vpop.xlane.xlu0 %41
  %v43 = vmul.f32 %v39, %v30
  %v44 = vmul.f32 %v42, %v30
  %v45 = vadd.f32 %v43, 1e-05
  %v46 = vadd.f32 %v44, 1e-05
  %v47 = vrsqrt.pop %v45
  %v48 = vrsqrt.pop %v46
  %v49 = vmul.f32 %v33, %v47
  %v50 = vmul.f32 %v34, %v48
  %v51 = vld [vmem:[%s1] sm:$0x1]
  %v53 = vlaneseq
  %v54 = vshrl.u32 %v53, 7
  %v55 = vsub.s32 0, %v54
  %v56 = vrot.slane %v51, %v55
  %v58 = vmul.f32 %v49, %v56
  %v59 = vmul.f32 %v50, %v56
  %v60 = vld [vmem:[%s2] sm:$0x1]
  %v62 = vlaneseq
  %v63 = vshrl.u32 %v62, 7
  %v64 = vsub.s32 0, %v63
  %v65 = vrot.slane %v60, %v64
  %v67 = vadd.f32 %v58, %v65
  %v68 = vadd.f32 %v59, %v65
  %v69 = vpack.c.bf16 %v68, %v67
  %v70 = vld [vmem:[%s3] sm:$0xf]
  %v71 = vld [vmem:[%s3 + $0x4] sm:$0xf]
  %v72 = vld [vmem:[%s3 + $0x8] sm:$0xf]
  %v73 = vld [vmem:[%s3 + $0xc] sm:$0xf]
  %v74 = vld [vmem:[%s4] sm:$0x1]
  %v76 = vlaneseq
  %v77 = vshrl.u32 %v76, 7
  %v78 = vsub.s32 0, %v77
  %v79 = vrot.slane %v74, %v78
  %v85 = vunpack.c.l.b16 %v70
  %v86 = vunpack.c.l.b16 %v71
  %v87 = vunpack.c.l.b16 %v72
  %v88 = vunpack.c.l.b16 %v73
  %v89 = vpack.c.b16 %v86, %v85
  %v90 = vpack.c.b16 %v88, %v87
  %v94 = vsel %vm23, %v69, 0
  %96 = vmatprep.subr.bf16.mxu0 0
  %97 = vmatpush1.bf16.msra.mxu0 %v89
  %98 = vmatprep.subr.bf16.mxu0 0
  %99 = vmatpush1.bf16.msra.mxu0 %v90
  %100 = vmatprep.subr.bf16.mxu0 0
  %101 = vmatpush1.bf16.msra.mxu0 0
  %102 = vmatprep.subr.bf16.mxu0 0
  %103 = vmatpush1.bf16.msra.mxu0 0
  %104 = vmatprep.subr.bf16.mxu0 0
  %105 = vmatpush1.bf16.msra.mxu0 0
  %106 = vmatprep.subr.bf16.mxu0 0
  %107 = vmatpush1.bf16.msra.mxu0 0
  %108 = vmatprep.subr.bf16.mxu0 0
  %109 = vmatpush1.bf16.msra.mxu0 0
  %110 = vmatprep.subr.bf16.mxu0 0
  %111 = vmatpush1.bf16.msra.mxu0 0
  %112 = vmatprep.subr.bf16.mxu0 0
  %113 = vmatpush1.bf16.msra.mxu0 0
  %114 = vmatprep.subr.bf16.mxu0 0
  %115 = vmatpush1.bf16.msra.mxu0 0
  %116 = vmatprep.subr.bf16.mxu0 0
  %117 = vmatpush1.bf16.msra.mxu0 0
  %118 = vmatprep.subr.bf16.mxu0 0
  %119 = vmatpush1.bf16.msra.mxu0 0
  %120 = vmatprep.subr.bf16.mxu0 0
  %121 = vmatpush1.bf16.msra.mxu0 0
  %122 = vmatprep.subr.bf16.mxu0 0
  %123 = vmatpush1.bf16.msra.mxu0 0
  %124 = vmatprep.subr.bf16.mxu0 0
  %125 = vmatpush1.bf16.msra.mxu0 0
  %126 = vmatprep.subr.bf16.mxu0 0
  %127 = vmatpush1.bf16.msra.mxu0 0
  %128 = vmatprep.mubr.bf16.mxu0 0
  %129 = vmatmul.mubr.bf16.gmra.mrb[0].mxu0 %v94
  %v130 = vpop.f32.mrb[0].mxu0
  %v131 = vadd.f32 %v79, %v130
  %v132 = vpop.f32.mrb[0].mxu0
  %v133 = vpop.f32.mrb[0].mxu0
  %v134 = vadd.f32 %v79, %v133
  %v135 = vpop.f32.mrb[0].mxu0
  %136 = vdwg.mxu0
  %v137 = vmul.f32 %v131, 0.5
  %v138 = vmul.f32 %v134, 0.5
  %v139 = vmul.f32 %v131, 0.044715
  %v140 = vmul.f32 %v134, 0.044715
  %v141 = vmul.f32 %v139, %v131
  %v142 = vmul.f32 %v140, %v134
  %v143 = vmul.f32 %v141, %v131
  %v144 = vmul.f32 %v142, %v134
  %v145 = vadd.f32 %v131, %v143
  %v146 = vadd.f32 %v134, %v144
  %v147 = vmul.f32 %v145, 0.7978846
  %v148 = vmul.f32 %v146, 0.7978846
  %v149 = vtanh.pop %v147
  %v150 = vtanh.pop %v148
  %v151 = vadd.f32 %v149, 1.0
  %v152 = vadd.f32 %v150, 1.0
  %v153 = vmul.f32 %v137, %v151
  %v154 = vmul.f32 %v138, %v152
  %155 = vst [vmem:[%s5] sm:$0xff] %v153
  %156 = vst [vmem:[%s5 + $0x8] sm:$0xff] %v154
  // Predicated region
  $region22: #{_lambda_.14} parent=0 // pred_check
    _
  $region23: #{_lambda_.14} parent=0 // pred_check_branch
    %158 = sbr.rel (0) target = $region25
  $region24: #{_lambda_.14} parent=0 // pred_region
    _
  $region25: #{_lambda_.14} parent=0 // pred_fallthru
    _
  // Predicated region
  $region26: #{_lambda_.14} parent=0 // pred_check
    _
  $region27: #{_lambda_.14} parent=0 // pred_check_branch
    %160 = sbr.rel (0) target = $region29
  $region28: #{_lambda_.14} parent=0 // pred_region
    _
  $region29: #{_lambda_.14} parent=0 // pred_fallthru
    _

// kernel: _lambda_.12
$region0: #{_lambda_.12}
  #allocation0 [shape = 'u32[]', space=smem, size = 0x4, offset = 0x4, fixed_abs, tag = 'smem constant byte address 0x4 - core index']
  #allocation1 [shape = 'u32[144,128]{1,0:T(1,128)}', space=vmem, size = 0x12000, scoped, tag = 'internal scratch']
  #allocation2 [shape = 'f32[4,8,1]{2,1,0:T(8,128)}', space=vmem, size = 0x4000, scoped, tag = 'scratch operand']
  #allocation3 [shape = 'f32[4,8,1]{2,1,0:T(8,128)}', space=vmem, size = 0x4000, scoped, tag = 'scratch operand']
  #allocation4 [shape = 'f32[4,8,8]{2,1,0:T(8,128)}', space=vmem, size = 0x4000, scoped, tag = 'scratch operand']
  %s0 = inlined_call_operand.vmem [shape: f32[2,8,96], index: 0, kind: input, shape index: {}, may-alias: {0,1}]
  %s1 = inlined_call_operand.vmem [shape: f32[2,8,96], index: 1, kind: input, shape index: {}, may-alias: {0,1}]
  %s2 = inlined_call_operand.vmem [shape: f32[2,8,32], index: 2, kind: output, shape index: {}]
  %s3 = sld [smem:[#allocation0]]
  $region49: #{_lambda_.12} parent=0
    _
  %s5 = ssub.s32 1, %s3
  %s6 = scalar_select 0, %s5, %s3
  loop: start=0, step=1, limit=4
  $region2: #{_lambda_.12} parent=0 // loop_pre_header
    _
  $region3: #{_lambda_.12} parent=0 // loop_header
    %s8 = sphi 0, %s12
    %p9 = scmp.ge.s32.totalorder %s8, 4
    %s15 = sphi 0, %s27
    %s16 = sphi 0, %s23
    %s17 = sphi 0, %s15
    %s18 = sphi 0, %s16
    %s19 = sphi 0, %s17
    %s20 = sphi 0, %s18
    %s30 = sphi 0, %s32
    %s33 = sphi 0, %s30
    %s34 = sphi 0, %s33
    %s50 = sphi 0, %s34
    %s58 = sphi 0, %s60
    %s61 = sphi 0, %s58
    %s62 = sphi 0, %s61
    %s78 = sphi 0, %s62
    %s84 = sphi 0, %s86
    %s87 = sphi 0, %s84
    %s88 = sphi 0, %s87
    %s104 = sphi 0, %s88
  $region4: #{_lambda_.12} parent=0 // loop_header_branch
    %11 = sbr.rel (%p9) target = $region8
  $region5: #{_lambda_.12} parent=0 // loop_body
    %s13 = ssub.s32 %s8, 1
    %s14 = ssub.s32 %s8, 2
    %s21 = sadd.s32 1, %s16
    %p22 = scmp.ge.s32.totalorder %s21, 1
    %s23 = scalar_select %p22, 0, %s21
    %s24 = sadd.s32 1, %s15
    %s25 = scalar_select %p22, %s24, %s15
    %p26 = scmp.ge.s32.totalorder %s25, 2
    %s27 = scalar_select %p26, 0, %s25
    %s28 = ssub.s32 %s15, %s27
    %p29 = scmp.eq.s32.totalorder %s28, 0
    %s31 = sadd.s32 %s30, 1
    %s32 = scalar_select %p29, %s30, %s31
    %p35 = pneg %p29
    %p36 = scmp.eq.s32.totalorder %s8, 1
    %p37 = por %p35, %p36
    %p38 = scmp.ne.s32.totalorder %s30, %s33
    %p39 = scmp.eq.s32.totalorder %s8, 0
    %p40 = por %p38, %p39
    %p41 = scmp.ne.s32.totalorder %s30, %s33
    %p42 = scmp.eq.s32.totalorder %s13, 1
    %p43 = por %p41, %p42
    %p44 = scmp.ne.s32.totalorder %s33, %s34
    %p45 = scmp.eq.s32.totalorder %s13, 0
    %p46 = por %p44, %p45
    %p47 = scmp.ne.s32.totalorder %s33, %s34
    %p48 = scmp.eq.s32.totalorder %s14, 1
    %p49 = por %p47, %p48
    %p51 = scmp.ne.s32.totalorder %s34, %s50
    %p52 = scmp.eq.s32.totalorder %s14, 0
    %p53 = por %p51, %p52
    %s54 = ssub.s32 %s15, %s27
    %s55 = ssub.s32 %s16, %s23
    %s56 = sor.u32 %s54, %s55
    %p57 = scmp.eq.s32.totalorder %s56, 0
    %s59 = sadd.s32 %s58, 1
    %s60 = scalar_select %p57, %s58, %s59
    %p63 = pneg %p57
    %p64 = scmp.eq.s32.totalorder %s8, 1
    %p65 = por %p63, %p64
    %p66 = scmp.ne.s32.totalorder %s58, %s61
    %p67 = scmp.eq.s32.totalorder %s8, 0
    %p68 = por %p66, %p67
    %p69 = scmp.ne.s32.totalorder %s58, %s61
    %p70 = scmp.eq.s32.totalorder %s13, 1
    %p71 = por %p69, %p70
    %p72 = scmp.ne.s32.totalorder %s61, %s62
    %p73 = scmp.eq.s32.totalorder %s13, 0
    %p74 = por %p72, %p73
    %p75 = scmp.ne.s32.totalorder %s61, %s62
    %p76 = scmp.eq.s32.totalorder %s14, 1
    %p77 = por %p75, %p76
    %p79 = scmp.ne.s32.totalorder %s62, %s78
    %p80 = scmp.eq.s32.totalorder %s14, 0
    %p81 = por %p79, %p80
    %s82 = ssub.s32 %s15, %s27
    %p83 = scmp.eq.s32.totalorder %s82, 0
    %s85 = sadd.s32 %s84, 1
    %s86 = scalar_select %p83, %s84, %s85
    %p89 = pneg %p83
    %p90 = scmp.eq.s32.totalorder %s8, 1
    %p91 = por %p89, %p90
    %p92 = scmp.ne.s32.totalorder %s84, %s87
    %p93 = scmp.eq.s32.totalorder %s8, 0
    %p94 = por %p92, %p93
    %p95 = scmp.ne.s32.totalorder %s84, %s87
    %p96 = scmp.eq.s32.totalorder %s13, 1
    %p97 = por %p95, %p96
    %p98 = scmp.ne.s32.totalorder %s87, %s88
    %p99 = scmp.eq.s32.totalorder %s13, 0
    %p100 = por %p98, %p99
    %p101 = scmp.ne.s32.totalorder %s87, %s88
    %p102 = scmp.eq.s32.totalorder %s14, 1
    %p103 = por %p101, %p102
    %p105 = scmp.ne.s32.totalorder %s88, %s104
    %p106 = scmp.eq.s32.totalorder %s14, 0
    %p107 = por %p105, %p106
    %p108 = scmp.le.s32.totalorder 1, %s8
    %p109 = scmp.lt.s32.totalorder %s8, 3
    %p110 = pnand %p108, %p109
    %p111 = pneg %p110
    // Predicated region
    $region9: #{_lambda_.12} parent=5 // pred_check
      _
    $region10: #{_lambda_.12} parent=5 // pred_check_branch
      %113 = sbr.rel (%p110) target = $region12
    $region11: #{_lambda_.12} parent=5 // pred_region
      %s114 = ssub.s32 %s8, 1
    $region12: #{_lambda_.12} parent=5 // pred_fallthru
      _
    %p115 = scmp.lt.s32.totalorder %s8, 2
    // Predicated region
    $region13: #{_lambda_.12} parent=5 // pred_check
      %p116 = pneg %p115
    $region14: #{_lambda_.12} parent=5 // pred_check_branch
      %118 = sbr.rel (%p116) target = $region16
    $region15: #{_lambda_.12} parent=5 // pred_region
      // Predicated region
      $region17: #{_lambda_.12} parent=15 // pred_check
        %p119 = pneg %p40
      $region18: #{_lambda_.12} parent=15 // pred_check_branch
        %121 = sbr.rel (%p119) target = $region20
      $region19: #{_lambda_.12} parent=15 // pred_region
        %p122 = scmp.lt.s32.totalorder %s15, 1
        %s123 = scalar_select %p122, %s15, 1
        %s124 = smul.addr %s123, 8
        %s125 = scalar_lea.vmem %s0, %s124
      $region20: #{_lambda_.12} parent=15 // pred_fallthru
        _
      // Predicated region
      $region21: #{_lambda_.12} parent=15 // pred_check
        %p126 = pneg %p68
      $region22: #{_lambda_.12} parent=15 // pred_check_branch
        %128 = sbr.rel (%p126) target = $region24
      $region23: #{_lambda_.12} parent=15 // pred_region
        %p129 = scmp.lt.s32.totalorder %s15, 1
        %s130 = scalar_select %p129, %s15, 1
        %p131 = scmp.lt.s32.totalorder %s16, 0
        %s132 = scalar_select %p131, %s16, 0
        %s133 = sadd.s32 %s132, %s130
        %s134 = smul.addr %s133, 8
        %s135 = scalar_lea.vmem %s1, %s134
      $region24: #{_lambda_.12} parent=15 // pred_fallthru
        _
    $region16: #{_lambda_.12} parent=5 // pred_fallthru
      _
    %p136 = scmp.le.s32.totalorder 1, %s8
    %p137 = scmp.lt.s32.totalorder %s8, 3
    %p138 = pnand %p136, %p137
    %p139 = pneg %p138
    // Predicated region
    $region25: #{_lambda_.12} parent=5 // pred_check
      _
    $region26: #{_lambda_.12} parent=5 // pred_check_branch
      %141 = sbr.rel (%p138) target = $region28
    $region27: #{_lambda_.12} parent=5 // pred_region
      %s142 = ssub.s32 %s8, 1
      %p143 = scmp.lt.s32.totalorder %s17, 1
      %s144 = scalar_select %p143, %s17, 1
      %s145 = smul.addr %s144, 8
      %s146 = scalar_lea.vmem %s0, %s145
      %p147 = pneg %p46
      %p148 = pneg %p43
      %p149 = scmp.lt.s32.totalorder %s17, 1
      %s150 = scalar_select %p149, %s17, 1
      %p151 = scmp.lt.s32.totalorder %s18, 0
      %s152 = scalar_select %p151, %s18, 0
      %s153 = sadd.s32 %s152, %s150
      %s154 = smul.addr %s153, 8
      %s155 = scalar_lea.vmem %s1, %s154
      %p156 = pneg %p74
      %p157 = pneg %p71
      %p158 = pneg %p100
      %p159 = pneg %p97
      %p160 = scmp.lt.s32.totalorder %s17, 1
      %s161 = scalar_select %p160, %s17, 1
      %s162 = smul.addr %s161, 8
      %s163 = scalar_lea.vmem %s2, %s162
      %p164 = scmp.lt.s32.totalorder %s17, 1
      %s165 = scalar_select %p164, %s17, 1
      %s166 = smul.addr %s165, 8
      %s167 = scalar_lea.vmem %s0, %s166
      %p168 = scmp.lt.s32.totalorder %s17, 1
      %s169 = scalar_select %p168, %s17, 1
      %p170 = scmp.lt.s32.totalorder %s18, 0
      %s171 = scalar_select %p170, %s18, 0
      %s172 = sadd.s32 %s171, %s169
      %s173 = smul.addr %s172, 8
      %s174 = scalar_lea.vmem %s1, %s173
      %p175 = scmp.lt.s32.totalorder %s17, 1
      %s176 = scalar_select %p175, %s17, 1
      %s177 = smul.addr %s176, 8
      %s178 = scalar_lea.vmem %s2, %s177
      %p180 = scmp.eq.s32.totalorder %s18, 0
      // Predicated region
      $region29: #{_lambda_.12} parent=27 // pred_check
        %p181 = pneg %p180
      $region30: #{_lambda_.12} parent=27 // pred_check_branch
        %183 = sbr.rel (%p181) target = $region32
      $region31: #{_lambda_.12} parent=27 // pred_region
        %vm184 = vcmask 7168
        %185 = vst.msk [vmem:[#allocation2] sm:$0xff] %vm184, -inf
        %186 = vst.msk [vmem:[#allocation2 + $0x8] sm:$0xff] %vm184, -inf
        %187 = vst.msk [vmem:[#allocation2 + $0x10] sm:$0xff] %vm184, -inf
        %188 = vst.msk [vmem:[#allocation2 + $0x18] sm:$0xff] %vm184, -inf
        %189 = vst.msk [vmem:[#allocation3] sm:$0xff] %vm184, 0.0
        %190 = vst.msk [vmem:[#allocation3 + $0x8] sm:$0xff] %vm184, 0.0
        %191 = vst.msk [vmem:[#allocation3 + $0x10] sm:$0xff] %vm184, 0.0
        %192 = vst.msk [vmem:[#allocation3 + $0x18] sm:$0xff] %vm184, 0.0
        %vm193 = vcmask 64512
        %194 = vst.msk [vmem:[#allocation4] sm:$0xff] %vm193, 0.0
        %195 = vst.msk [vmem:[#allocation4 + $0x8] sm:$0xff] %vm193, 0.0
        %196 = vst.msk [vmem:[#allocation4 + $0x10] sm:$0xff] %vm193, 0.0
        %197 = vst.msk [vmem:[#allocation4 + $0x18] sm:$0xff] %vm193, 0.0
      $region32: #{_lambda_.12} parent=27 // pred_fallthru
        _
      %v198 = vld [vmem:[%s167] sm:$0xff]
      %v199 = vld [vmem:[%s174] sm:$0xff]
      %v200 = vlaneseq
      %v201 = vshrl.u32 %v200, 7
      %v202 = vlaneseq
      %v203 = vand.u32 %v202, 127
      %s204 = smul.u32 %s18, 8
      %v205 = vstv %s204
      %v206 = vadd.s32 %v203, %v205
      %vm207 = vcmp.le.s32.totalorder %v206, %v201
      %v208 = vpack.c.bf16 %v198, %v198
      %v209 = vpack.c.bf16 %v199, %v199
      %211 = vrot.lane.b32.xlu0 %v209, 96
      %v212 = vpop.permute.xlu0 %211
      %vm213 = vcmask 64512
      %v215 = vsel %vm213, %v208, 0
      %v218 = vsel %vm213, %v212, 0
      %220 = vmatprep.subr.bf16.mxu0 0
      %221 = vmatpush1.bf16.xpose.msra.mxu0 %v218
      %222 = vmatprep.subr.bf16.mxu0 0
      %223 = vmatpush1.bf16.xpose.msra.mxu0 0
      %224 = vmatprep.subr.bf16.mxu0 0
      %225 = vmatpush1.bf16.xpose.msra.mxu0 0
      %226 = vmatprep.subr.bf16.mxu0 0
      %227 = vmatpush1.bf16.xpose.msra.mxu0 0
      %228 = vmatprep.subr.bf16.mxu0 0
      %229 = vmatpush1.bf16.xpose.msra.mxu0 0
      %230 = vmatprep.subr.bf16.mxu0 0
      %231 = vmatpush1.bf16.xpose.msra.mxu0 0
      %232 = vmatprep.subr.bf16.mxu0 0
      %233 = vmatpush1.bf16.xpose.msra.mxu0 0
      %234 = vmatprep.subr.bf16.mxu0 0
      %235 = vmatpush1.bf16.xpose.msra.mxu0 0
      %236 = vmatprep.subr.bf16.mxu0 0
      %237 = vmatpush1.bf16.xpose.msra.mxu0 0
      %238 = vmatprep.subr.bf16.mxu0 0
      %239 = vmatpush1.bf16.xpose.msra.mxu0 0
      %240 = vmatprep.subr.bf16.mxu0 0
      %241 = vmatpush1.bf16.xpose.msra.mxu0 0
      %242 = vmatprep.subr.bf16.mxu0 0
      %243 = vmatpush1.bf16.xpose.msra.mxu0 0
      %244 = vmatprep.subr.bf16.mxu0 0
      %245 = vmatpush1.bf16.xpose.msra.mxu0 0
      %246 = vmatprep.subr.bf16.mxu0 0
      %247 = vmatpush1.bf16.xpose.msra.mxu0 0
      %248 = vmatprep.subr.bf16.mxu0 0
      %249 = vmatpush1.bf16.xpose.msra.mxu0 0
      %250 = vmatprep.subr.bf16.mxu0 0
      %251 = vmatpush1.bf16.xpose.msra.mxu0 0
      %252 = vmatprep.mubr.bf16.mxu0 0
      %253 = vmatmul.mubr.bf16.gmra.mrb[0].mxu0 %v215
      %v254 = vpop.f32.mrb[0].mxu0
      %v255 = vadd.f32 0.0, %v254
      %v256 = vpop.f32.mrb[0].mxu0
      %v257 = vpop.f32.mrb[0].mxu0
      %v258 = vpop.f32.mrb[0].mxu0
      %259 = vdwg.mxu0
      %v260 = vmul.f32 %v255, 0.35355338
      %v261 = vsel %vm207, %v260, -inf
      %v262 = vld [vmem:[#allocation2] sm:$0xff]
      %v263 = vsel %vm213, %v261, -inf
      %264 = vmax.xlane.f32.xlu0 %v263
      %v265 = vpop.xlane.xlu0 %264
      %v266 = vmax.f32 %v262, %v265
      %v267 = vsub.f32 %v262, %v266
      %v268 = vmul.f32 %v267, 1.442695
      %v269 = vpow.pop %v268
      %271 = vset.pattern.permute.xlu0 0
      %272 = vperm.xlu0 %271, %v266
      %v273 = vpop.permute.xlu0 %272
      %v275 = vsub.f32 %v261, %v273
      %v276 = vmul.f32 %v275, 1.442695
      %v277 = vpow.pop %v276
      %v278 = vld [vmem:[#allocation3] sm:$0xff]
      %v279 = vmul.f32 %v269, %v278
      %v280 = vsel %vm213, %v277, 0.0
      %281 = vadd.xlane.f32.xlu0 %v280
      %v282 = vpop.xlane.xlu0 %281
      %v283 = vadd.f32 %v279, %v282
      %vm284 = vcmask 7168
      %285 = vst.msk [vmem:[#allocation3] sm:$0xff] %vm284, %v283
      %v286 = vld [vmem:[#allocation4] sm:$0xff]
      %288 = vset.pattern.permute.xlu0 0
      %289 = vperm.xlu0 %288, %v269
      %v290 = vpop.permute.xlu0 %289
      %v292 = vmul.f32 %v290, %v286
      %v293 = vpack.c.bf16 %v277, %v277
      %294 = vrot.lane.b32.xlu0 %v209, 64
      %v295 = vpop.permute.xlu0 %294
      %v297 = vsel %vm213, %v293, 0
      %vm299 = vcmask 1043456
      %v301 = vsel %vm299, %v295, 0
      %303 = vmatprep.subr.bf16.mxu0 0
      %304 = vmatpush1.bf16.msra.mxu0 %v301
      %305 = vmatprep.subr.bf16.mxu0 0
      %306 = vmatpush1.bf16.msra.mxu0 0
      %307 = vmatprep.subr.bf16.mxu0 0
      %308 = vmatpush1.bf16.msra.mxu0 0
      %309 = vmatprep.subr.bf16.mxu0 0
      %310 = vmatpush1.bf16.msra.mxu0 0
      %311 = vmatprep.subr.bf16.mxu0 0
      %312 = vmatpush1.bf16.msra.mxu0 0
      %313 = vmatprep.subr.bf16.mxu0 0
      %314 = vmatpush1.bf16.msra.mxu0 0
      %315 = vmatprep.subr.bf16.mxu0 0
      %316 = vmatpush1.bf16.msra.mxu0 0
      %317 = vmatprep.subr.bf16.mxu0 0
      %318 = vmatpush1.bf16.msra.mxu0 0
      %319 = vmatprep.subr.bf16.mxu0 0
      %320 = vmatpush1.bf16.msra.mxu0 0
      %321 = vmatprep.subr.bf16.mxu0 0
      %322 = vmatpush1.bf16.msra.mxu0 0
      %323 = vmatprep.subr.bf16.mxu0 0
      %324 = vmatpush1.bf16.msra.mxu0 0
      %325 = vmatprep.subr.bf16.mxu0 0
      %326 = vmatpush1.bf16.msra.mxu0 0
      %327 = vmatprep.subr.bf16.mxu0 0
      %328 = vmatpush1.bf16.msra.mxu0 0
      %329 = vmatprep.subr.bf16.mxu0 0
      %330 = vmatpush1.bf16.msra.mxu0 0
      %331 = vmatprep.subr.bf16.mxu0 0
      %332 = vmatpush1.bf16.msra.mxu0 0
      %333 = vmatprep.subr.bf16.mxu0 0
      %334 = vmatpush1.bf16.msra.mxu0 0
      %335 = vmatprep.mubr.bf16.mxu0 0
      %336 = vmatmul.mubr.bf16.gmra.mrb[0].mxu0 %v297
      %v337 = vpop.f32.mrb[0].mxu0
      %v338 = vadd.f32 0.0, %v337
      %v339 = vpop.f32.mrb[0].mxu0
      %v340 = vpop.f32.mrb[0].mxu0
      %v341 = vpop.f32.mrb[0].mxu0
      %342 = vdwg.mxu0
      %v343 = vadd.f32 %v292, %v338
      %344 = vst.msk [vmem:[#allocation4] sm:$0xff] %vm213, %v343
      %345 = vst.msk [vmem:[#allocation2] sm:$0xff] %vm284, %v266
      %347 = vrot.lane.b32.xlu0 %v208, 120
      %v348 = vpop.permute.xlu0 %347
      %349 = vrot.lane.b32.xlu0 %v209, 88
      %v350 = vpop.permute.xlu0 %349
      %v352 = vsel %vm213, %v348, 0
      %v355 = vsel %vm213, %v350, 0
      %357 = vmatprep.subr.bf16.mxu0 0
      %358 = vmatpush1.bf16.xpose.msra.mxu0 %v355
      %359 = vmatprep.subr.bf16.mxu0 0
      %360 = vmatpush1.bf16.xpose.msra.mxu0 0
      %361 = vmatprep.subr.bf16.mxu0 0
      %362 = vmatpush1.bf16.xpose.msra.mxu0 0
      %363 = vmatprep.subr.bf16.mxu0 0
      %364 = vmatpush1.bf16.xpose.msra.mxu0 0
      %365 = vmatprep.subr.bf16.mxu0 0
      %366 = vmatpush1.bf16.xpose.msra.mxu0 0
      %367 = vmatprep.subr.bf16.mxu0 0
      %368 = vmatpush1.bf16.xpose.msra.mxu0 0
      %369 = vmatprep.subr.bf16.mxu0 0
      %370 = vmatpush1.bf16.xpose.msra.mxu0 0
      %371 = vmatprep.subr.bf16.mxu0 0
      %372 = vmatpush1.bf16.xpose.msra.mxu0 0
      %373 = vmatprep.subr.bf16.mxu0 0
      %374 = vmatpush1.bf16.xpose.msra.mxu0 0
      %375 = vmatprep.subr.bf16.mxu0 0
      %376 = vmatpush1.bf16.xpose.msra.mxu0 0
      %377 = vmatprep.subr.bf16.mxu0 0
      %378 = vmatpush1.bf16.xpose.msra.mxu0 0
      %379 = vmatprep.subr.bf16.mxu0 0
      %380 = vmatpush1.bf16.xpose.msra.mxu0 0
      %381 = vmatprep.subr.bf16.mxu0 0
      %382 = vmatpush1.bf16.xpose.msra.mxu0 0
      %383 = vmatprep.subr.bf16.mxu0 0
      %384 = vmatpush1.bf16.xpose.msra.mxu0 0
      %385 = vmatprep.subr.bf16.mxu0 0
      %386 = vmatpush1.bf16.xpose.msra.mxu0 0
      %387 = vmatprep.subr.bf16.mxu0 0
      %388 = vmatpush1.bf16.xpose.msra.mxu0 0
      %389 = vmatprep.mubr.bf16.mxu0 0
      %390 = vmatmul.mubr.bf16.gmra.mrb[0].mxu0 %v352
      %v391 = vpop.f32.mrb[0].mxu0
      %v392 = vadd.f32 0.0, %v391
      %v393 = vpop.f32.mrb[0].mxu0
      %v394 = vpop.f32.mrb[0].mxu0
      %v395 = vpop.f32.mrb[0].mxu0
      %396 = vdwg.mxu0
      %v397 = vmul.f32 %v392, 0.35355338
      %v398 = vsel %vm207, %v397, -inf
      %s399 = scalar_lea.vmem [#allocation2], 8
      %v400 = vld [vmem:[%s399] sm:$0xff]
      %v401 = vsel %vm213, %v398, -inf
      %402 = vmax.xlane.f32.xlu0 %v401
      %v403 = vpop.xlane.xlu0 %402
      %v404 = vmax.f32 %v400, %v403
      %v405 = vsub.f32 %v400, %v404
      %v406 = vmul.f32 %v405, 1.442695
      %v407 = vpow.pop %v406
      %409 = vset.pattern.permute.xlu0 0
      %410 = vperm.xlu0 %409, %v404
      %v411 = vpop.permute.xlu0 %410
      %v413 = vsub.f32 %v398, %v411
      %v414 = vmul.f32 %v413, 1.442695
      %v415 = vpow.pop %v414
      %s416 = scalar_lea.vmem [#allocation3], 8
      %v417 = vld [vmem:[%s416] sm:$0xff]
      %v418 = vmul.f32 %v407, %v417
      %v419 = vsel %vm213, %v415, 0.0
      %420 = vadd.xlane.f32.xlu0 %v419
      %v421 = vpop.xlane.xlu0 %420
      %v422 = vadd.f32 %v418, %v421
      %423 = vst.msk [vmem:[%s416] sm:$0xff] %vm284, %v422
      %s424 = scalar_lea.vmem [#allocation4], 8
      %v425 = vld [vmem:[%s424] sm:$0xff]
      %427 = vset.pattern.permute.xlu0 0
      %428 = vperm.xlu0 %427, %v407
      %v429 = vpop.permute.xlu0 %428
      %v431 = vmul.f32 %v429, %v425
      %v432 = vpack.c.bf16 %v415, %v415
      %433 = vrot.lane.b32.xlu0 %v209, 56
      %v434 = vpop.permute.xlu0 %433
      %v436 = vsel %vm213, %v432, 0
      %v439 = vsel %vm299, %v434, 0
      %441 = vmatprep.subr.bf16.mxu0 0
      %442 = vmatpush1.bf16.msra.mxu0 %v439
      %443 = vmatprep.subr.bf16.mxu0 0
      %444 = vmatpush1.bf16.msra.mxu0 0
      %445 = vmatprep.subr.bf16.mxu0 0
      %446 = vmatpush1.bf16.msra.mxu0 0
      %447 = vmatprep.subr.bf16.mxu0 0
      %448 = vmatpush1.bf16.msra.mxu0 0
      %449 = vmatprep.subr.bf16.mxu0 0
      %450 = vmatpush1.bf16.msra.mxu0 0
      %451 = vmatprep.subr.bf16.mxu0 0
      %452 = vmatpush1.bf16.msra.mxu0 0
      %453 = vmatprep.subr.bf16.mxu0 0
      %454 = vmatpush1.bf16.msra.mxu0 0
      %455 = vmatprep.subr.bf16.mxu0 0
      %456 = vmatpush1.bf16.msra.mxu0 0
      %457 = vmatprep.subr.bf16.mxu0 0
      %458 = vmatpush1.bf16.msra.mxu0 0
      %459 = vmatprep.subr.bf16.mxu0 0
      %460 = vmatpush1.bf16.msra.mxu0 0
      %461 = vmatprep.subr.bf16.mxu0 0
      %462 = vmatpush1.bf16.msra.mxu0 0
      %463 = vmatprep.subr.bf16.mxu0 0
      %464 = vmatpush1.bf16.msra.mxu0 0
      %465 = vmatprep.subr.bf16.mxu0 0
      %466 = vmatpush1.bf16.msra.mxu0 0
      %467 = vmatprep.subr.bf16.mxu0 0
      %468 = vmatpush1.bf16.msra.mxu0 0
      %469 = vmatprep.subr.bf16.mxu0 0
      %470 = vmatpush1.bf16.msra.mxu0 0
      %471 = vmatprep.subr.bf16.mxu0 0
      %472 = vmatpush1.bf16.msra.mxu0 0
      %473 = vmatprep.mubr.bf16.mxu0 0
      %474 = vmatmul.mubr.bf16.gmra.mrb[0].mxu0 %v436
      %v475 = vpop.f32.mrb[0].mxu0
      %v476 = vadd.f32 0.0, %v475
      %v477 = vpop.f32.mrb[0].mxu0
      %v478 = vpop.f32.mrb[0].mxu0
      %v479 = vpop.f32.mrb[0].mxu0
      %480 = vdwg.mxu0
      %v481 = vadd.f32 %v431, %v476
      %482 = vst.msk [vmem:[%s424] sm:$0xff] %vm213, %v481
      %483 = vst.msk [vmem:[%s399] sm:$0xff] %vm284, %v404
      %484 = vrot.lane.b32.xlu0 %v208, 112
      %v485 = vpop.permute.xlu0 %484
      %486 = vrot.lane.b32.xlu0 %v209, 80
      %v487 = vpop.permute.xlu0 %486
      %v489 = vsel %vm213, %v485, 0
      %v492 = vsel %vm213, %v487, 0
      %494 = vmatprep.subr.bf16.mxu0 0
      %495 = vmatpush1.bf16.xpose.msra.mxu0 %v492
      %496 = vmatprep.subr.bf16.mxu0 0
      %497 = vmatpush1.bf16.xpose.msra.mxu0 0
      %498 = vmatprep.subr.bf16.mxu0 0
      %499 = vmatpush1.bf16.xpose.msra.mxu0 0
      %500 = vmatprep.subr.bf16.mxu0 0
      %501 = vmatpush1.bf16.xpose.msra.mxu0 0
      %502 = vmatprep.subr.bf16.mxu0 0
      %503 = vmatpush1.bf16.xpose.msra.mxu0 0
      %504 = vmatprep.subr.bf16.mxu0 0
      %505 = vmatpush1.bf16.xpose.msra.mxu0 0
      %506 = vmatprep.subr.bf16.mxu0 0
      %507 = vmatpush1.bf16.xpose.msra.mxu0 0
      %508 = vmatprep.subr.bf16.mxu0 0
      %509 = vmatpush1.bf16.xpose.msra.mxu0 0
      %510 = vmatprep.subr.bf16.mxu0 0
      %511 = vmatpush1.bf16.xpose.msra.mxu0 0
      %512 = vmatprep.subr.bf16.mxu0 0
      %513 = vmatpush1.bf16.xpose.msra.mxu0 0
      %514 = vmatprep.subr.bf16.mxu0 0
      %515 = vmatpush1.bf16.xpose.msra.mxu0 0
      %516 = vmatprep.subr.bf16.mxu0 0
      %517 = vmatpush1.bf16.xpose.msra.mxu0 0
      %518 = vmatprep.subr.bf16.mxu0 0
      %519 = vmatpush1.bf16.xpose.msra.mxu0 0
      %520 = vmatprep.subr.bf16.mxu0 0
      %521 = vmatpush1.bf16.xpose.msra.mxu0 0
      %522 = vmatprep.subr.bf16.mxu0 0
      %523 = vmatpush1.bf16.xpose.msra.mxu0 0
      %524 = vmatprep.subr.bf16.mxu0 0
      %525 = vmatpush1.bf16.xpose.msra.mxu0 0
      %526 = vmatprep.mubr.bf16.mxu0 0
      %527 = vmatmul.mubr.bf16.gmra.mrb[0].mxu0 %v489
      %v528 = vpop.f32.mrb[0].mxu0
      %v529 = vadd.f32 0.0, %v528
      %v530 = vpop.f32.mrb[0].mxu0
      %v531 = vpop.f32.mrb[0].mxu0
      %v532 = vpop.f32.mrb[0].mxu0
      %533 = vdwg.mxu0
      %v534 = vmul.f32 %v529, 0.35355338
      %v535 = vsel %vm207, %v534, -inf
      %s536 = scalar_lea.vmem [#allocation2], 16
      %v537 = vld [vmem:[%s536] sm:$0xff]
      %v538 = vsel %vm213, %v535, -inf
      %539 = vmax.xlane.f32.xlu0 %v538
      %v540 = vpop.xlane.xlu0 %539
      %v541 = vmax.f32 %v537, %v540
      %v542 = vsub.f32 %v537, %v541
      %v543 = vmul.f32 %v542, 1.442695
      %v544 = vpow.pop %v543
      %546 = vset.pattern.permute.xlu0 0
      %547 = vperm.xlu0 %546, %v541
      %v548 = vpop.permute.xlu0 %547
      %v550 = vsub.f32 %v535, %v548
      %v551 = vmul.f32 %v550, 1.442695
      %v552 = vpow.pop %v551
      %s553 = scalar_lea.vmem [#allocation3], 16
      %v554 = vld [vmem:[%s553] sm:$0xff]
      %v555 = vmul.f32 %v544, %v554
      %v556 = vsel %vm213, %v552, 0.0
      %557 = vadd.xlane.f32.xlu0 %v556
      %v558 = vpop.xlane.xlu0 %557
      %v559 = vadd.f32 %v555, %v558
      %560 = vst.msk [vmem:[%s553] sm:$0xff] %vm284, %v559
      %s561 = scalar_lea.vmem [#allocation4], 16
      %v562 = vld [vmem:[%s561] sm:$0xff]
      %564 = vset.pattern.permute.xlu0 0
      %565 = vperm.xlu0 %564, %v544
      %v566 = vpop.permute.xlu0 %565
      %v568 = vmul.f32 %v566, %v562
      %v569 = vpack.c.bf16 %v552, %v552
      %570 = vrot.lane.b32.xlu0 %v209, 48
      %v571 = vpop.permute.xlu0 %570
      %v573 = vsel %vm213, %v569, 0
      %v576 = vsel %vm299, %v571, 0
      %578 = vmatprep.subr.bf16.mxu0 0
      %579 = vmatpush1.bf16.msra.mxu0 %v576
      %580 = vmatprep.subr.bf16.mxu0 0
      %581 = vmatpush1.bf16.msra.mxu0 0
      %582 = vmatprep.subr.bf16.mxu0 0
      %583 = vmatpush1.bf16.msra.mxu0 0
      %584 = vmatprep.subr.bf16.mxu0 0
      %585 = vmatpush1.bf16.msra.mxu0 0
      %586 = vmatprep.subr.bf16.mxu0 0
      %587 = vmatpush1.bf16.msra.mxu0 0
      %588 = vmatprep.subr.bf16.mxu0 0
      %589 = vmatpush1.bf16.msra.mxu0 0
      %590 = vmatprep.subr.bf16.mxu0 0
      %591 = vmatpush1.bf16.msra.mxu0 0
      %592 = vmatprep.subr.bf16.mxu0 0
      %593 = vmatpush1.bf16.msra.mxu0 0
      %594 = vmatprep.subr.bf16.mxu0 0
      %595 = vmatpush1.bf16.msra.mxu0 0
      %596 = vmatprep.subr.bf16.mxu0 0
      %597 = vmatpush1.bf16.msra.mxu0 0
      %598 = vmatprep.subr.bf16.mxu0 0
      %599 = vmatpush1.bf16.msra.mxu0 0
      %600 = vmatprep.subr.bf16.mxu0 0
      %601 = vmatpush1.bf16.msra.mxu0 0
      %602 = vmatprep.subr.bf16.mxu0 0
      %603 = vmatpush1.bf16.msra.mxu0 0
      %604 = vmatprep.subr.bf16.mxu0 0
      %605 = vmatpush1.bf16.msra.mxu0 0
      %606 = vmatprep.subr.bf16.mxu0 0
      %607 = vmatpush1.bf16.msra.mxu0 0
      %608 = vmatprep.subr.bf16.mxu0 0
      %609 = vmatpush1.bf16.msra.mxu0 0
      %610 = vmatprep.mubr.bf16.mxu0 0
      %611 = vmatmul.mubr.bf16.gmra.mrb[0].mxu0 %v573
      %v612 = vpop.f32.mrb[0].mxu0
      %v613 = vadd.f32 0.0, %v612
      %v614 = vpop.f32.mrb[0].mxu0
      %v615 = vpop.f32.mrb[0].mxu0
      %v616 = vpop.f32.mrb[0].mxu0
      %617 = vdwg.mxu0
      %v618 = vadd.f32 %v568, %v613
      %619 = vst.msk [vmem:[%s561] sm:$0xff] %vm213, %v618
      %620 = vst.msk [vmem:[%s536] sm:$0xff] %vm284, %v541
      %621 = vrot.lane.b32.xlu0 %v208, 104
      %v622 = vpop.permute.xlu0 %621
      %623 = vrot.lane.b32.xlu0 %v209, 72
      %v624 = vpop.permute.xlu0 %623
      %v626 = vsel %vm213, %v622, 0
      %v629 = vsel %vm213, %v624, 0
      %631 = vmatprep.subr.bf16.mxu0 0
      %632 = vmatpush1.bf16.xpose.msra.mxu0 %v629
      %633 = vmatprep.subr.bf16.mxu0 0
      %634 = vmatpush1.bf16.xpose.msra.mxu0 0
      %635 = vmatprep.subr.bf16.mxu0 0
      %636 = vmatpush1.bf16.xpose.msra.mxu0 0
      %637 = vmatprep.subr.bf16.mxu0 0
      %638 = vmatpush1.bf16.xpose.msra.mxu0 0
      %639 = vmatprep.subr.bf16.mxu0 0
      %640 = vmatpush1.bf16.xpose.msra.mxu0 0
      %641 = vmatprep.subr.bf16.mxu0 0
      %642 = vmatpush1.bf16.xpose.msra.mxu0 0
      %643 = vmatprep.subr.bf16.mxu0 0
      %644 = vmatpush1.bf16.xpose.msra.mxu0 0
      %645 = vmatprep.subr.bf16.mxu0 0
      %646 = vmatpush1.bf16.xpose.msra.mxu0 0
      %647 = vmatprep.subr.bf16.mxu0 0
      %648 = vmatpush1.bf16.xpose.msra.mxu0 0
      %649 = vmatprep.subr.bf16.mxu0 0
      %650 = vmatpush1.bf16.xpose.msra.mxu0 0
      %651 = vmatprep.subr.bf16.mxu0 0
      %652 = vmatpush1.bf16.xpose.msra.mxu0 0
      %653 = vmatprep.subr.bf16.mxu0 0
      %654 = vmatpush1.bf16.xpose.msra.mxu0 0
      %655 = vmatprep.subr.bf16.mxu0 0
      %656 = vmatpush1.bf16.xpose.msra.mxu0 0
      %657 = vmatprep.subr.bf16.mxu0 0
      %658 = vmatpush1.bf16.xpose.msra.mxu0 0
      %659 = vmatprep.subr.bf16.mxu0 0
      %660 = vmatpush1.bf16.xpose.msra.mxu0 0
      %661 = vmatprep.subr.bf16.mxu0 0
      %662 = vmatpush1.bf16.xpose.msra.mxu0 0
      %663 = vmatprep.mubr.bf16.mxu0 0
      %664 = vmatmul.mubr.bf16.gmra.mrb[0].mxu0 %v626
      %v665 = vpop.f32.mrb[0].mxu0
      %v666 = vadd.f32 0.0, %v665
      %v667 = vpop.f32.mrb[0].mxu0
      %v668 = vpop.f32.mrb[0].mxu0
      %v669 = vpop.f32.mrb[0].mxu0
      %670 = vdwg.mxu0
      %v671 = vmul.f32 %v666, 0.35355338
      %v672 = vsel %vm207, %v671, -inf
      %s673 = scalar_lea.vmem [#allocation2], 24
      %v674 = vld [vmem:[%s673] sm:$0xff]
      %v675 = vsel %vm213, %v672, -inf
      %676 = vmax.xlane.f32.xlu0 %v675
      %v677 = vpop.xlane.xlu0 %676
      %v678 = vmax.f32 %v674, %v677
      %v679 = vsub.f32 %v674, %v678
      %v680 = vmul.f32 %v679, 1.442695
      %v681 = vpow.pop %v680
      %683 = vset.pattern.permute.xlu0 0
      %684 = vperm.xlu0 %683, %v678
      %v685 = vpop.permute.xlu0 %684
      %v687 = vsub.f32 %v672, %v685
      %v688 = vmul.f32 %v687, 1.442695
      %v689 = vpow.pop %v688
      %s690 = scalar_lea.vmem [#allocation3], 24
      %v691 = vld [vmem:[%s690] sm:$0xff]
      %v692 = vmul.f32 %v681, %v691
      %v693 = vsel %vm213, %v689, 0.0
      %694 = vadd.xlane.f32.xlu0 %v693
      %v695 = vpop.xlane.xlu0 %694
      %v696 = vadd.f32 %v692, %v695
      %697 = vst.msk [vmem:[%s690] sm:$0xff] %vm284, %v696
      %s698 = scalar_lea.vmem [#allocation4], 24
      %v699 = vld [vmem:[%s698] sm:$0xff]
      %701 = vset.pattern.permute.xlu0 0
      %702 = vperm.xlu0 %701, %v681
      %v703 = vpop.permute.xlu0 %702
      %v705 = vmul.f32 %v703, %v699
      %v706 = vpack.c.bf16 %v689, %v689
      %707 = vrot.lane.b32.xlu0 %v209, 40
      %v708 = vpop.permute.xlu0 %707
      %v710 = vsel %vm213, %v706, 0
      %v713 = vsel %vm299, %v708, 0
      %715 = vmatprep.subr.bf16.mxu0 0
      %716 = vmatpush1.bf16.msra.mxu0 %v713
      %717 = vmatprep.subr.bf16.mxu0 0
      %718 = vmatpush1.bf16.msra.mxu0 0
      %719 = vmatprep.subr.bf16.mxu0 0
      %720 = vmatpush1.bf16.msra.mxu0 0
      %721 = vmatprep.subr.bf16.mxu0 0
      %722 = vmatpush1.bf16.msra.mxu0 0
      %723 = vmatprep.subr.bf16.mxu0 0
      %724 = vmatpush1.bf16.msra.mxu0 0
      %725 = vmatprep.subr.bf16.mxu0 0
      %726 = vmatpush1.bf16.msra.mxu0 0
      %727 = vmatprep.subr.bf16.mxu0 0
      %728 = vmatpush1.bf16.msra.mxu0 0
      %729 = vmatprep.subr.bf16.mxu0 0
      %730 = vmatpush1.bf16.msra.mxu0 0
      %731 = vmatprep.subr.bf16.mxu0 0
      %732 = vmatpush1.bf16.msra.mxu0 0
      %733 = vmatprep.subr.bf16.mxu0 0
      %734 = vmatpush1.bf16.msra.mxu0 0
      %735 = vmatprep.subr.bf16.mxu0 0
      %736 = vmatpush1.bf16.msra.mxu0 0
      %737 = vmatprep.subr.bf16.mxu0 0
      %738 = vmatpush1.bf16.msra.mxu0 0
      %739 = vmatprep.subr.bf16.mxu0 0
      %740 = vmatpush1.bf16.msra.mxu0 0
      %741 = vmatprep.subr.bf16.mxu0 0
      %742 = vmatpush1.bf16.msra.mxu0 0
      %743 = vmatprep.subr.bf16.mxu0 0
      %744 = vmatpush1.bf16.msra.mxu0 0
      %745 = vmatprep.subr.bf16.mxu0 0
      %746 = vmatpush1.bf16.msra.mxu0 0
      %747 = vmatprep.mubr.bf16.mxu0 0
      %748 = vmatmul.mubr.bf16.gmra.mrb[0].mxu0 %v710
      %v749 = vpop.f32.mrb[0].mxu0
      %v750 = vadd.f32 0.0, %v749
      %v751 = vpop.f32.mrb[0].mxu0
      %v752 = vpop.f32.mrb[0].mxu0
      %v753 = vpop.f32.mrb[0].mxu0
      %754 = vdwg.mxu0
      %v755 = vadd.f32 %v705, %v750
      %756 = vst.msk [vmem:[%s698] sm:$0xff] %vm213, %v755
      %757 = vst.msk [vmem:[%s673] sm:$0xff] %vm284, %v678
      // Predicated region
      $region33: #{_lambda_.12} parent=27 // pred_check
        %p758 = pneg %p180
      $region34: #{_lambda_.12} parent=27 // pred_check_branch
        %760 = sbr.rel (%p758) target = $region36
      $region35: #{_lambda_.12} parent=27 // pred_region
        %v761 = vld [vmem:[#allocation4] sm:$0xff]
        %v762 = vld [vmem:[#allocation3] sm:$0xff]
        %v763 = vrcp.pop %v762
        %765 = vset.pattern.permute.xlu0 0
        %766 = vperm.xlu0 %765, %v763
        %v767 = vpop.permute.xlu0 %766
        %v769 = vmul.f32 %v761, %v767
        %v770 = vld [vmem:[%s424] sm:$0xff]
        %v771 = vld [vmem:[%s416] sm:$0xff]
        %v772 = vrcp.pop %v771
        %774 = vset.pattern.permute.xlu0 0
        %775 = vperm.xlu0 %774, %v772
        %v776 = vpop.permute.xlu0 %775
        %v778 = vmul.f32 %v770, %v776
        %v779 = vld [vmem:[%s561] sm:$0xff]
        %v780 = vld [vmem:[%s553] sm:$0xff]
        %v781 = vrcp.pop %v780
        %783 = vset.pattern.permute.xlu0 0
        %784 = vperm.xlu0 %783, %v781
        %v785 = vpop.permute.xlu0 %784
        %v787 = vmul.f32 %v779, %v785
        %v788 = vld [vmem:[%s698] sm:$0xff]
        %v789 = vld [vmem:[%s690] sm:$0xff]
        %v790 = vrcp.pop %v789
        %792 = vset.pattern.permute.xlu0 0
        %793 = vperm.xlu0 %792, %v790
        %v794 = vpop.permute.xlu0 %793
        %v796 = vmul.f32 %v788, %v794
        %798 = vrot.lane.b32.xlu0 %v778, 8
        %v799 = vpop.permute.xlu0 %798
        %802 = vrot.lane.b32.xlu0 %v787, 16
        %v803 = vpop.permute.xlu0 %802
        %806 = vrot.lane.b32.xlu0 %v796, 24
        %v807 = vpop.permute.xlu0 %806
        %v809 = vsel %vm213, %v769, %v799
        %vm810 = vcmask 130048
        %v811 = vsel %vm810, %v809, %v803
        %vm812 = vcmask 195584
        %v813 = vsel %vm812, %v811, %v807
        %vm814 = vcmask 261120
        %815 = vst.msk [vmem:[%s178] sm:$0xff] %vm814, %v813
      $region36: #{_lambda_.12} parent=27 // pred_fallthru
        _
      %p816 = scmp.lt.s32.totalorder %s17, 1
      %s817 = scalar_select %p816, %s17, 1
      %s818 = smul.addr %s817, 8
      %s819 = scalar_lea.vmem %s2, %s818
      // Predicated region
      $region37: #{_lambda_.12} parent=27 // pred_check
        %p820 = pneg %p97
      $region38: #{_lambda_.12} parent=27 // pred_check_branch
        %822 = sbr.rel (%p820) target = $region40
      $region39: #{_lambda_.12} parent=27 // pred_region
        _
      $region40: #{_lambda_.12} parent=27 // pred_fallthru
        _
    $region28: #{_lambda_.12} parent=5 // pred_fallthru
      _
    %p823 = scmp.le.s32.totalorder 2, %s8
    // Predicated region
    $region41: #{_lambda_.12} parent=5 // pred_check
      %p824 = pneg %p823
    $region42: #{_lambda_.12} parent=5 // pred_check_branch
      %826 = sbr.rel (%p824) target = $region44
    $region43: #{_lambda_.12} parent=5 // pred_region
      %s827 = ssub.s32 %s8, 2
      // Predicated region
      $region45: #{_lambda_.12} parent=43 // pred_check
        %p828 = pneg %p103
      $region46: #{_lambda_.12} parent=43 // pred_check_branch
        %830 = sbr.rel (%p828) target = $region48
      $region47: #{_lambda_.12} parent=43 // pred_region
        %p831 = scmp.lt.s32.totalorder %s19, 1
        %s832 = scalar_select %p831, %s19, 1
        %s833 = smul.addr %s832, 8
        %s834 = scalar_lea.vmem %s2, %s833
      $region48: #{_lambda_.12} parent=43 // pred_fallthru
        _
    $region44: #{_lambda_.12} parent=5 // pred_fallthru
      _
  $region6: #{_lambda_.12} parent=0 // loop_footer
    %s12 = sadd.s32 1, %s8
  $region7: #{_lambda_.12} parent=0 // loop_footer_branch
    %7 = sbr.rel target = $region3
  $region8: #{_lambda_.12} parent=0 // loop_exit
    _

// kernel: _lambda_.15
$region0: #{_lambda_.15}
  #allocation0 [shape = 'u32[]', space=smem, size = 0x4, offset = 0x4, fixed_abs, tag = 'smem constant byte address 0x4 - core index']
  #allocation1 [shape = 'u32[144,128]{1,0:T(1,128)}', space=vmem, size = 0x12000, scoped, tag = 'internal scratch']
  #allocation2 [shape = 'f32[16,32]{1,0:T(8,128)}', space=vmem, size = 0x2000, scoped, tag = 'scratch operand']
  %s0 = inlined_call_operand.vmem [shape: f32[16,128], index: 0, kind: input, shape index: {}]
  %s1 = inlined_call_operand.vmem [shape: bf16[128,32], index: 1, kind: input, shape index: {}]
  %s2 = inlined_call_operand.vmem [shape: f32[1,32], index: 2, kind: input, shape index: {}]
  %s3 = inlined_call_operand.vmem [shape: f32[16,32], index: 3, kind: input, shape index: {}]
  %s4 = inlined_call_operand.vmem [shape: f32[16,32], index: 4, kind: output, shape index: {}]
  %s5 = sld [smem:[#allocation0]]
  $region34: #{_lambda_.15} parent=0
    _
  %s7 = ssub.s32 1, %s5
  %s8 = scalar_select 0, %s7, %s5
  // Predicated region
  $region2: #{_lambda_.15} parent=0 // pred_check
    _
  $region3: #{_lambda_.15} parent=0 // pred_check_branch
    %10 = sbr.rel (0) target = $region5
  $region4: #{_lambda_.15} parent=0 // pred_region
    _
  $region5: #{_lambda_.15} parent=0 // pred_fallthru
    _
  // Predicated region
  $region6: #{_lambda_.15} parent=0 // pred_check
    _
  $region7: #{_lambda_.15} parent=0 // pred_check_branch
    %12 = sbr.rel (0) target = $region9
  $region8: #{_lambda_.15} parent=0 // pred_region
    _
  $region9: #{_lambda_.15} parent=0 // pred_fallthru
    _
  // Predicated region
  $region10: #{_lambda_.15} parent=0 // pred_check
    _
  $region11: #{_lambda_.15} parent=0 // pred_check_branch
    %14 = sbr.rel (0) target = $region13
  $region12: #{_lambda_.15} parent=0 // pred_region
    _
  $region13: #{_lambda_.15} parent=0 // pred_fallthru
    _
  // Predicated region
  $region14: #{_lambda_.15} parent=0 // pred_check
    _
  $region15: #{_lambda_.15} parent=0 // pred_check_branch
    %16 = sbr.rel (0) target = $region17
  $region16: #{_lambda_.15} parent=0 // pred_region
    _
  $region17: #{_lambda_.15} parent=0 // pred_fallthru
    _
  %p18 = scmp.eq.s32.totalorder 0, 0
  // Predicated region
  $region18: #{_lambda_.15} parent=0 // pred_check
    %p19 = pneg %p18
  $region19: #{_lambda_.15} parent=0 // pred_check_branch
    %21 = sbr.rel (%p19) target = $region21
  $region20: #{_lambda_.15} parent=0 // pred_region
    %vm22 = vcmask 261120
    %23 = vst.msk [vmem:[#allocation2] sm:$0xff] %vm22, 0.0
    %24 = vst.msk [vmem:[#allocation2 + $0x8] sm:$0xff] %vm22, 0.0
  $region21: #{_lambda_.15} parent=0 // pred_fallthru
    _
  %v25 = vld [vmem:[#allocation2] sm:$0xff]
  %v26 = vld [vmem:[#allocation2 + $0x8] sm:$0xff]
  %v27 = vld [vmem:[%s0] sm:$0xff]
  %v28 = vld [vmem:[%s0 + $0x8] sm:$0xff]
  %v29 = vpack.c.bf16 %v28, %v27
  %v30 = vld [vmem:[%s1] sm:$0xf]
  %v31 = vld [vmem:[%s1 + $0x4] sm:$0xf]
  %v32 = vld [vmem:[%s1 + $0x8] sm:$0xf]
  %v33 = vld [vmem:[%s1 + $0xc] sm:$0xf]
  %v34 = vld [vmem:[%s1 + $0x10] sm:$0xf]
  %v35 = vld [vmem:[%s1 + $0x14] sm:$0xf]
  %v36 = vld [vmem:[%s1 + $0x18] sm:$0xf]
  %v37 = vld [vmem:[%s1 + $0x1c] sm:$0xf]
  %v38 = vld [vmem:[%s1 + $0x20] sm:$0xf]
  %v39 = vld [vmem:[%s1 + $0x24] sm:$0xf]
  %v40 = vld [vmem:[%s1 + $0x28] sm:$0xf]
  %v41 = vld [vmem:[%s1 + $0x2c] sm:$0xf]
  %v42 = vld [vmem:[%s1 + $0x30] sm:$0xf]
  %v43 = vld [vmem:[%s1 + $0x34] sm:$0xf]
  %v44 = vld [vmem:[%s1 + $0x38] sm:$0xf]
  %v45 = vld [vmem:[%s1 + $0x3c] sm:$0xf]
  %v62 = vunpack.c.l.b16 %v30
  %v63 = vunpack.c.l.b16 %v31
  %v64 = vunpack.c.l.b16 %v32
  %v65 = vunpack.c.l.b16 %v33
  %v66 = vunpack.c.l.b16 %v34
  %v67 = vunpack.c.l.b16 %v35
  %v68 = vunpack.c.l.b16 %v36
  %v69 = vunpack.c.l.b16 %v37
  %v70 = vunpack.c.l.b16 %v38
  %v71 = vunpack.c.l.b16 %v39
  %v72 = vunpack.c.l.b16 %v40
  %v73 = vunpack.c.l.b16 %v41
  %v74 = vunpack.c.l.b16 %v42
  %v75 = vunpack.c.l.b16 %v43
  %v76 = vunpack.c.l.b16 %v44
  %v77 = vunpack.c.l.b16 %v45
  %v78 = vpack.c.b16 %v63, %v62
  %v79 = vpack.c.b16 %v65, %v64
  %v80 = vpack.c.b16 %v67, %v66
  %v81 = vpack.c.b16 %v69, %v68
  %v82 = vpack.c.b16 %v71, %v70
  %v83 = vpack.c.b16 %v73, %v72
  %v84 = vpack.c.b16 %v75, %v74
  %v85 = vpack.c.b16 %v77, %v76
  %94 = vmatprep.subr.bf16.mxu0 0
  %95 = vmatpush1.bf16.msra.mxu0 %v78
  %96 = vmatprep.subr.bf16.mxu0 0
  %97 = vmatpush1.bf16.msra.mxu0 %v79
  %98 = vmatprep.subr.bf16.mxu0 0
  %99 = vmatpush1.bf16.msra.mxu0 %v80
  %100 = vmatprep.subr.bf16.mxu0 0
  %101 = vmatpush1.bf16.msra.mxu0 %v81
  %102 = vmatprep.subr.bf16.mxu0 0
  %103 = vmatpush1.bf16.msra.mxu0 %v82
  %104 = vmatprep.subr.bf16.mxu0 0
  %105 = vmatpush1.bf16.msra.mxu0 %v83
  %106 = vmatprep.subr.bf16.mxu0 0
  %107 = vmatpush1.bf16.msra.mxu0 %v84
  %108 = vmatprep.subr.bf16.mxu0 0
  %109 = vmatpush1.bf16.msra.mxu0 %v85
  %110 = vmatprep.subr.bf16.mxu0 0
  %111 = vmatpush1.bf16.msra.mxu0 0
  %112 = vmatprep.subr.bf16.mxu0 0
  %113 = vmatpush1.bf16.msra.mxu0 0
  %114 = vmatprep.subr.bf16.mxu0 0
  %115 = vmatpush1.bf16.msra.mxu0 0
  %116 = vmatprep.subr.bf16.mxu0 0
  %117 = vmatpush1.bf16.msra.mxu0 0
  %118 = vmatprep.subr.bf16.mxu0 0
  %119 = vmatpush1.bf16.msra.mxu0 0
  %120 = vmatprep.subr.bf16.mxu0 0
  %121 = vmatpush1.bf16.msra.mxu0 0
  %122 = vmatprep.subr.bf16.mxu0 0
  %123 = vmatpush1.bf16.msra.mxu0 0
  %124 = vmatprep.subr.bf16.mxu0 0
  %125 = vmatpush1.bf16.msra.mxu0 0
  %126 = vmatprep.mubr.bf16.mxu0 0
  %127 = vmatmul.mubr.bf16.gmra.mrb[0].mxu0 %v29
  %v128 = vpop.f32.mrb[0].mxu0
  %v129 = vadd.f32 0.0, %v128
  %v130 = vpop.f32.mrb[0].mxu0
  %v131 = vpop.f32.mrb[0].mxu0
  %v132 = vadd.f32 0.0, %v131
  %v133 = vpop.f32.mrb[0].mxu0
  %134 = vdwg.mxu0
  %v135 = vadd.f32 %v25, %v129
  %v136 = vadd.f32 %v26, %v132
  %vm137 = vcmask 261120
  %138 = vst.msk [vmem:[#allocation2] sm:$0xff] %vm137, %v135
  %139 = vst.msk [vmem:[#allocation2 + $0x8] sm:$0xff] %vm137, %v136
  // Predicated region
  $region22: #{_lambda_.15} parent=0 // pred_check
    %p140 = pneg %p18
  $region23: #{_lambda_.15} parent=0 // pred_check_branch
    %142 = sbr.rel (%p140) target = $region25
  $region24: #{_lambda_.15} parent=0 // pred_region
    %v143 = vld [vmem:[#allocation2] sm:$0xff]
    %v144 = vld [vmem:[#allocation2 + $0x8] sm:$0xff]
    %v145 = vld [vmem:[%s2] sm:$0x1]
    %v147 = vlaneseq
    %v148 = vshrl.u32 %v147, 7
    %v149 = vsub.s32 0, %v148
    %v150 = vrot.slane %v145, %v149
    %v152 = vadd.f32 %v143, %v150
    %v153 = vadd.f32 %v144, %v150
    %v154 = vld [vmem:[%s3] sm:$0xff]
    %v155 = vld [vmem:[%s3 + $0x8] sm:$0xff]
    %v156 = vadd.f32 %v152, %v154
    %v157 = vadd.f32 %v153, %v155
    %158 = vst.msk [vmem:[%s4] sm:$0xff] %vm137, %v156
    %159 = vst.msk [vmem:[%s4 + $0x8] sm:$0xff] %vm137, %v157
  $region25: #{_lambda_.15} parent=0 // pred_fallthru
    _
  // Predicated region
  $region26: #{_lambda_.15} parent=0 // pred_check
    _
  $region27: #{_lambda_.15} parent=0 // pred_check_branch
    %161 = sbr.rel (0) target = $region29
  $region28: #{_lambda_.15} parent=0 // pred_region
    _
  $region29: #{_lambda_.15} parent=0 // pred_fallthru
    _
  // Predicated region
  $region30: #{_lambda_.15} parent=0 // pred_check
    _
  $region31: #{_lambda_.15} parent=0 // pred_check_branch
    %163 = sbr.rel (0) target = $region33
  $region32: #{_lambda_.15} parent=0 // pred_region
    _
  $region33: #{_lambda_.15} parent=0 // pred_fallthru
    _

// kernel: _lambda_.21
$region0: #{_lambda_.21}
  #allocation0 [shape = 'u32[]', space=smem, size = 0x4, offset = 0x4, fixed_abs, tag = 'smem constant byte address 0x4 - core index']
  #allocation1 [shape = 'u32[144,128]{1,0:T(1,128)}', space=vmem, size = 0x12000, scoped, tag = 'internal scratch']
  %s0 = inlined_call_operand.vmem [shape: f32[16,32], index: 0, kind: input, shape index: {}]
  %s1 = inlined_call_operand.vmem [shape: f32[1,32], index: 1, kind: input, shape index: {}]
  %s2 = inlined_call_operand.vmem [shape: f32[1,32], index: 2, kind: input, shape index: {}]
  %s3 = inlined_call_operand.vmem [shape: bf16[32,128], index: 3, kind: input, shape index: {}]
  %s4 = inlined_call_operand.vmem [shape: f32[1,128], index: 4, kind: input, shape index: {}]
  %s5 = inlined_call_operand.vmem [shape: f32[16,128], index: 5, kind: output, shape index: {}]
  %s6 = sld [smem:[#allocation0]]
  $region30: #{_lambda_.21} parent=0
    _
  %s8 = ssub.s32 1, %s6
  %s9 = scalar_select 0, %s8, %s6
  // Predicated region
  $region2: #{_lambda_.21} parent=0 // pred_check
    _
  $region3: #{_lambda_.21} parent=0 // pred_check_branch
    %11 = sbr.rel (0) target = $region5
  $region4: #{_lambda_.21} parent=0 // pred_region
    _
  $region5: #{_lambda_.21} parent=0 // pred_fallthru
    _
  // Predicated region
  $region6: #{_lambda_.21} parent=0 // pred_check
    _
  $region7: #{_lambda_.21} parent=0 // pred_check_branch
    %13 = sbr.rel (0) target = $region9
  $region8: #{_lambda_.21} parent=0 // pred_region
    _
  $region9: #{_lambda_.21} parent=0 // pred_fallthru
    _
  // Predicated region
  $region10: #{_lambda_.21} parent=0 // pred_check
    _
  $region11: #{_lambda_.21} parent=0 // pred_check_branch
    %15 = sbr.rel (0) target = $region13
  $region12: #{_lambda_.21} parent=0 // pred_region
    _
  $region13: #{_lambda_.21} parent=0 // pred_fallthru
    _
  // Predicated region
  $region14: #{_lambda_.21} parent=0 // pred_check
    _
  $region15: #{_lambda_.21} parent=0 // pred_check_branch
    %17 = sbr.rel (0) target = $region17
  $region16: #{_lambda_.21} parent=0 // pred_region
    _
  $region17: #{_lambda_.21} parent=0 // pred_fallthru
    _
  // Predicated region
  $region18: #{_lambda_.21} parent=0 // pred_check
    _
  $region19: #{_lambda_.21} parent=0 // pred_check_branch
    %19 = sbr.rel (0) target = $region21
  $region20: #{_lambda_.21} parent=0 // pred_region
    _
  $region21: #{_lambda_.21} parent=0 // pred_fallthru
    _
  %v21 = vld [vmem:[%s0] sm:$0xff]
  %v22 = vld [vmem:[%s0 + $0x8] sm:$0xff]
  %vm23 = vcmask 261120
  %v24 = vsel %vm23, %v21, 0.0
  %25 = vadd.xlane.f32.xlu0 %v24
  %v26 = vpop.xlane.xlu0 %25
  %v27 = vsel %vm23, %v22, 0.0
  %28 = vadd.xlane.f32.xlu0 %v27
  %v29 = vpop.xlane.xlu0 %28
  %v30 = vrcp.pop 32.0
  %v31 = vmul.f32 %v26, %v30
  %v32 = vmul.f32 %v29, %v30
  %v33 = vsub.f32 %v21, %v31
  %v34 = vsub.f32 %v22, %v32
  %v35 = vmul.f32 %v33, %v33
  %v36 = vmul.f32 %v34, %v34
  %v37 = vsel %vm23, %v35, 0.0
  %38 = vadd.xlane.f32.xlu0 %v37
  %v39 = vpop.xlane.xlu0 %38
  %v40 = vsel %vm23, %v36, 0.0
  %41 = vadd.xlane.f32.xlu0 %v40
  %v42 = vpop.xlane.xlu0 %41
  %v43 = vmul.f32 %v39, %v30
  %v44 = vmul.f32 %v42, %v30
  %v45 = vadd.f32 %v43, 1e-05
  %v46 = vadd.f32 %v44, 1e-05
  %v47 = vrsqrt.pop %v45
  %v48 = vrsqrt.pop %v46
  %v49 = vmul.f32 %v33, %v47
  %v50 = vmul.f32 %v34, %v48
  %v51 = vld [vmem:[%s1] sm:$0x1]
  %v53 = vlaneseq
  %v54 = vshrl.u32 %v53, 7
  %v55 = vsub.s32 0, %v54
  %v56 = vrot.slane %v51, %v55
  %v58 = vmul.f32 %v49, %v56
  %v59 = vmul.f32 %v50, %v56
  %v60 = vld [vmem:[%s2] sm:$0x1]
  %v62 = vlaneseq
  %v63 = vshrl.u32 %v62, 7
  %v64 = vsub.s32 0, %v63
  %v65 = vrot.slane %v60, %v64
  %v67 = vadd.f32 %v58, %v65
  %v68 = vadd.f32 %v59, %v65
  %v69 = vpack.c.bf16 %v68, %v67
  %v70 = vld [vmem:[%s3] sm:$0xf]
  %v71 = vld [vmem:[%s3 + $0x4] sm:$0xf]
  %v72 = vld [vmem:[%s3 + $0x8] sm:$0xf]
  %v73 = vld [vmem:[%s3 + $0xc] sm:$0xf]
  %v74 = vld [vmem:[%s4] sm:$0x1]
  %v76 = vlaneseq
  %v77 = vshrl.u32 %v76, 7
  %v78 = vsub.s32 0, %v77
  %v79 = vrot.slane %v74, %v78
  %v85 = vunpack.c.l.b16 %v70
  %v86 = vunpack.c.l.b16 %v71
  %v87 = vunpack.c.l.b16 %v72
  %v88 = vunpack.c.l.b16 %v73
  %v89 = vpack.c.b16 %v86, %v85
  %v90 = vpack.c.b16 %v88, %v87
  %v94 = vsel %vm23, %v69, 0
  %96 = vmatprep.subr.bf16.mxu0 0
  %97 = vmatpush1.bf16.msra.mxu0 %v89
  %98 = vmatprep.subr.bf16.mxu0 0
  %99 = vmatpush1.bf16.msra.mxu0 %v90
  %100 = vmatprep.subr.bf16.mxu0 0
  %101 = vmatpush1.bf16.msra.mxu0 0
  %102 = vmatprep.subr.bf16.mxu0 0
  %103 = vmatpush1.bf16.msra.mxu0 0
  %104 = vmatprep.subr.bf16.mxu0 0
  %105 = vmatpush1.bf16.msra.mxu0 0
  %106 = vmatprep.subr.bf16.mxu0 0
  %107 = vmatpush1.bf16.msra.mxu0 0
  %108 = vmatprep.subr.bf16.mxu0 0
  %109 = vmatpush1.bf16.msra.mxu0 0
  %110 = vmatprep.subr.bf16.mxu0 0
  %111 = vmatpush1.bf16.msra.mxu0 0
  %112 = vmatprep.subr.bf16.mxu0 0
  %113 = vmatpush1.bf16.msra.mxu0 0
  %114 = vmatprep.subr.bf16.mxu0 0
  %115 = vmatpush1.bf16.msra.mxu0 0
  %116 = vmatprep.subr.bf16.mxu0 0
  %117 = vmatpush1.bf16.msra.mxu0 0
  %118 = vmatprep.subr.bf16.mxu0 0
  %119 = vmatpush1.bf16.msra.mxu0 0
  %120 = vmatprep.subr.bf16.mxu0 0
  %121 = vmatpush1.bf16.msra.mxu0 0
  %122 = vmatprep.subr.bf16.mxu0 0
  %123 = vmatpush1.bf16.msra.mxu0 0
  %124 = vmatprep.subr.bf16.mxu0 0
  %125 = vmatpush1.bf16.msra.mxu0 0
  %126 = vmatprep.subr.bf16.mxu0 0
  %127 = vmatpush1.bf16.msra.mxu0 0
  %128 = vmatprep.mubr.bf16.mxu0 0
  %129 = vmatmul.mubr.bf16.gmra.mrb[0].mxu0 %v94
  %v130 = vpop.f32.mrb[0].mxu0
  %v131 = vadd.f32 %v79, %v130
  %v132 = vpop.f32.mrb[0].mxu0
  %v133 = vpop.f32.mrb[0].mxu0
  %v134 = vadd.f32 %v79, %v133
  %v135 = vpop.f32.mrb[0].mxu0
  %136 = vdwg.mxu0
  %137 = vst [vmem:[%s5] sm:$0xff] %v131
  %138 = vst [vmem:[%s5 + $0x8] sm:$0xff] %v134
  // Predicated region
  $region22: #{_lambda_.21} parent=0 // pred_check
    _
  $region23: #{_lambda_.21} parent=0 // pred_check_branch
    %140 = sbr.rel (0) target = $region25
  $region24: #{_lambda_.21} parent=0 // pred_region
    _
  $region25: #{_lambda_.21} parent=0 // pred_fallthru
    _
  // Predicated region
  $region26: #{_lambda_.21} parent=0 // pred_check
    _
  $region27: #{_lambda_.21} parent=0 // pred_check_branch
    %142 = sbr.rel (0) target = $region29
  $region28: #{_lambda_.21} parent=0 // pred_region
    _
  $region29: #{_lambda_.21} parent=0 // pred_fallthru
    _

</llo_original>
